<compile_context>
chip_gen: v7x
topology: tpu7x:2x2x1
jax: 0.10.0
libtpu: 0.0.40
codegen_flags: <defaults>
</compile_context>

<pallas_src>
import functools

import jax
import jax.numpy as jnp
from jax import lax
from jax.experimental import pallas as pl
from jax.experimental.pallas import tpu as pltpu

_EPS = 1e-5


def _erf(x):
    # Abramowitz & Stegun 7.1.26, |error| <= 1.5e-7.
    a1, a2, a3, a4, a5 = 0.254829592, -0.284496736, 1.421413741, -1.453152027, 1.061405429
    p = 0.3275911
    ax = jnp.abs(x)
    u = 1.0 + p * ax
    # EUP approximate reciprocal (frees VALU slots) + one Newton step -> f32 accuracy.
    t = pl.reciprocal(u, approx=True)
    t = t * (2.0 - u * t)
    poly = ((((a5 * t + a4) * t + a3) * t + a2) * t + a1) * t
    y = 1.0 - poly * jnp.exp(-ax * ax)
    return jnp.where(x >= 0, y, -y)


def _gelu_exact(x):
    # nn.GELU() default: 0.5 * x * (1 + erf(x / sqrt(2)))
    return 0.5 * x * (1.0 + _erf(x * 0.7071067811865476))


def _lane_coords(TM, Hp, Wp):
    """Per-lane (row, col) coordinates inside a pooled image, built in-kernel."""
    lane = lax.broadcasted_iota(jnp.int32, (1, TM), 1)
    if (Wp & (Wp - 1)) == 0 and (Hp & (Hp - 1)) == 0:
        # power-of-two fast path: pure shift/and (always supported)
        ww = lane & (Wp - 1)
        hh = (lane >> (Wp.bit_length() - 1)) & (Hp - 1)
    else:
        hh = (lane // Wp) % Hp
        ww = lane % Wp
    return hh, ww


def _im2col_conv(x_cm, w_ref, xpad_ref, col_ref, *, Hp, Wp):
    """3x3 'same' conv of a lane-dense (C, TM) slab as ONE MXU matmul.

    The block holds whole pooled images, so all halo handling is internal:
    taps that fall outside an image are zeroed with in-kernel validity strips.
    """
    C, TM = x_cm.shape
    j0 = Wp + 1  # halo width on each side of the flat pixel axis

    # Halo-only zeroing (interior is fully overwritten right below).
    xpad_ref[:, 0:j0] = jnp.zeros((C, j0), jnp.float32)
    xpad_ref[:, j0 + TM:j0 + TM + j0] = jnp.zeros((C, j0), jnp.float32)
    xpad_ref[:, j0:j0 + TM] = x_cm

    hh, ww = _lane_coords(TM, Hp, Wp)
    h_lo, h_hi = hh > 0, hh < Hp - 1
    w_lo, w_hi = ww > 0, ww < Wp - 1

    for k in range(9):
        dh, dw = k // 3 - 1, k % 3 - 1
        s = dh * Wp + dw
        tap = xpad_ref[:, j0 + s:j0 + s + TM]  # (C, TM), static slice
        valid = None
        if dh == -1:
            valid = h_lo
        elif dh == 1:
            valid = h_hi
        if dw == -1:
            valid = w_lo if valid is None else (valid & w_lo)
        elif dw == 1:
            valid = w_hi if valid is None else (valid & w_hi)
        if valid is not None:                  # centre tap (k == 4) stays unmasked
            tap = jnp.where(valid, tap, 0.0)
        col_ref[k * C:(k + 1) * C, :] = tap

    # (Cout, 9C) x (9C, TM) single MXU matmul, f32 accumulate.
    return jnp.dot(w_ref[...], col_ref[...], preferred_element_type=jnp.float32)


# ----------------------------- kernels (3 passes) -----------------------------
def _pool_conv1_kernel(xp_ref, w_ref, z_ref, s_ref, q_ref, xpad_ref, col_ref, *, Hp, Wp):
    # MaxPool2d((2,2)): max over the four pre-gathered 2x2 window-corner planes.
    xm = jnp.maximum(jnp.maximum(xp_ref[0], xp_ref[1]),
                     jnp.maximum(xp_ref[2], xp_ref[3]))          # (Cin, TM)
    z = _im2col_conv(xm, w_ref, xpad_ref, col_ref, Hp=Hp, Wp=Wp)  # (Cout, TM), pre-BN
    z_ref[...] = z
    # Per-block partial BN statistics (combined by the wrapper -> grid stays parallel).
    s_ref[0] = jnp.sum(z, axis=1, keepdims=True)
    q_ref[0] = jnp.sum(z * z, axis=1, keepdims=True)


def _bn_gelu_conv2_kernel(z1_ref, sc_ref, sh_ref, w_ref, z_ref, s_ref, q_ref,
                          xpad_ref, col_ref, *, Hp, Wp):
    h = _gelu_exact(z1_ref[...] * sc_ref[...] + sh_ref[...])      # BN1 affine + GELU
    z = _im2col_conv(h, w_ref, xpad_ref, col_ref, Hp=Hp, Wp=Wp)   # (Cout, TM), pre-BN
    z_ref[...] = z
    s_ref[0] = jnp.sum(z, axis=1, keepdims=True)
    q_ref[0] = jnp.sum(z * z, axis=1, keepdims=True)


def _bn_gelu_kernel(z2_ref, sc_ref, sh_ref, o_ref):
    o_ref[...] = _gelu_exact(z2_ref[...] * sc_ref[...] + sh_ref[...])


# --------------------------------- wrapper ---------------------------------
def _pick_images_per_block(N, PB, target_lanes):
    """Largest divisor NB of N such that NB*PB is lane-aligned and <= target."""
    divisors = [d for d in range(1, N + 1) if N % d == 0]
    aligned = [d for d in divisors if (d * PB) % 128 == 0]
    fitting = [d for d in aligned if d * PB <= target_lanes]
    if fitting:
        return max(fitting)
    if aligned:
        return min(aligned)
    return N  # single block: TM == M, so no lane-alignment constraint applies


def downsized_convolution_block(x_nchw, params, *, target_lanes=2048):
    """PyTorch-equivalent forward. Input/output are NCHW float32."""
    N, Cin, H, W = x_nchw.shape
    Hp, Wp = H // 2, W // 2
    PB = Hp * Wp
    M = N * PB
    Cout = params["w1"].shape[0]

    NB = _pick_images_per_block(N, PB, target_lanes)  # images per grid block
    G = N // NB
    TM = NB * PB                                      # lanes per grid block

    x = x_nchw.astype(jnp.float32)
    # (N,Cin,H,W) -> (4, Cin, M): the four 2x2-pool corner planes with pixel index
    # m = n*Hp*Wp + h*Wp + w flattened onto the lane axis (XLA glue).
    # TODO(synk): fuse this gather into pass 1 (strided DMA) so the input is read once.
    xprep = (x.reshape(N, Cin, Hp, 2, Wp, 2)
              .transpose(3, 5, 1, 0, 2, 4)
              .reshape(4, Cin, M))

    def prep_w(w):  # PyTorch (Cout, Cin, 3, 3) -> (Cout, 9*Cin) im2col weight slab
        co, ci = w.shape[0], w.shape[1]
        return jnp.transpose(w, (0, 2, 3, 1)).reshape(co, 9 * ci).astype(jnp.float32)

    w1s, w2s = prep_w(params["w1"]), prep_w(params["w2"])
    # Conv biases b1/b2 intentionally dropped: a per-channel constant added before
    # training-mode BatchNorm cancels exactly (mean removes it, variance unchanged).

    par = pltpu.CompilerParams(dimension_semantics=("parallel",))
    stat_shape = jax.ShapeDtypeStruct((G, Cout, 1), jnp.float32)
    stat_spec = pl.BlockSpec((1, Cout, 1), lambda g: (g, 0, 0))
    z_shape = jax.ShapeDtypeStruct((Cout, M), jnp.float32)
    z_spec = pl.BlockSpec((Cout, TM), lambda g: (0, g))
    vec_spec = pl.BlockSpec((Cout, 1), lambda g: (0, 0))

    # ---- pass 1: maxpool + conv1 -> z1 (pre-BN, HBM) + partial BN1 stats ----
    z1, s1, q1 = pl.pallas_call(
        functools.partial(_pool_conv1_kernel, Hp=Hp, Wp=Wp),
        grid=(G,),
        in_specs=[pl.BlockSpec((4, Cin, TM), lambda g: (0, 0, g)),
                  pl.BlockSpec((Cout, 9 * Cin), lambda g: (0, 0))],
        out_specs=[z_spec, stat_spec, stat_spec],
        out_shape=[z_shape, stat_shape, stat_shape],
        scratch_shapes=[pltpu.VMEM((Cin, TM + 2 * (Wp + 1)), jnp.float32),
                        pltpu.VMEM((9 * Cin, TM), jnp.float32)],
        compiler_params=par,
    )(xprep, w1s)

    def bn_affine(s, q, gamma, beta):
        mean = jnp.sum(s, axis=0) / M                      # (Cout, 1)
        var = jnp.sum(q, axis=0) / M - mean * mean         # biased (training-mode) var
        scale = gamma.reshape(-1, 1).astype(jnp.float32) * lax.rsqrt(var + _EPS)
        shift = beta.reshape(-1, 1).astype(jnp.float32) - mean * scale
        return scale, shift

    sc1, sh1 = bn_affine(s1, q1, params["g1"], params["bt1"])

    # ---- pass 2: BN1 affine + GELU + conv2 -> z2 (pre-BN, HBM) + partial BN2 stats ----
    z2, s2, q2 = pl.pallas_call(
        functools.partial(_bn_gelu_conv2_kernel, Hp=Hp, Wp=Wp),
        grid=(G,),
        in_specs=[z_spec, vec_spec, vec_spec,
                  pl.BlockSpec((Cout, 9 * Cout), lambda g: (0, 0))],
        out_specs=[z_spec, stat_spec, stat_spec],
        out_shape=[z_shape, stat_shape, stat_shape],
        scratch_shapes=[pltpu.VMEM((Cout, TM + 2 * (Wp + 1)), jnp.float32),
                        pltpu.VMEM((9 * Cout, TM), jnp.float32)],
        compiler_params=par,
    )(z1, sc1, sh1, w2s)

    sc2, sh2 = bn_affine(s2, q2, params["g2"], params["bt2"])

    # ---- pass 3: BN2 affine + GELU -> lane-dense output ----
    out_cm = pl.pallas_call(
        _bn_gelu_kernel,
        grid=(G,),
        in_specs=[z_spec, vec_spec, vec_spec],
        out_specs=z_spec,
        out_shape=z_shape,
        compiler_params=par,
    )(z2, sc2, sh2)

    # (Cout, N*Hp*Wp) -> NCHW (leading-axis transpose in XLA).
    # TODO(synk): write NCHW directly from pass 3 to drop this HBM round trip.
    return out_cm.reshape(Cout, N, Hp, Wp).transpose(1, 0, 2, 3)


# ------------------------- pure-JAX reference -------------------------
def _reference(x_nchw, params):
    x = jnp.transpose(x_nchw, (0, 2, 3, 1))  # NHWC
    N, H, W, C = x.shape
    x = x.reshape(N, H // 2, 2, W // 2, 2, C).max(axis=(2, 4))  # maxpool 2x2

    def conv(x, w, b):  # w: (Cout, Cin, 3, 3)
        wt = jnp.transpose(w, (2, 3, 1, 0))  # HWIO
        y = lax.conv_general_dilated(x, wt, (1, 1), "SAME",
                                     dimension_numbers=("NHWC", "HWIO", "NHWC"))
        return y + b

    def bn(x, g, bt):
        m = x.mean(axis=(0, 1, 2), keepdims=True)
        v = ((x - m) ** 2).mean(axis=(0, 1, 2), keepdims=True)
        return (x - m) / jnp.sqrt(v + _EPS) * g + bt

    y = jax.nn.gelu(bn(conv(x, params["w1"], params["b1"]), params["g1"], params["bt1"]),
                    approximate=False)
    y = jax.nn.gelu(bn(conv(y, params["w2"], params["b2"]), params["g2"], params["bt2"]),
                    approximate=False)
    return jnp.transpose(y, (0, 3, 1, 2))


def _init_params(key, cin, cout):
    ks = jax.random.split(key, 8)
    return {
        "w1": 0.2 * jax.random.normal(ks[0], (cout, cin, 3, 3), jnp.float32),
        "b1": 0.1 * jax.random.normal(ks[1], (cout,), jnp.float32),
        "g1": 1.0 + 0.1 * jax.random.normal(ks[2], (cout,), jnp.float32),
        "bt1": 0.1 * jax.random.normal(ks[3], (cout,), jnp.float32),
        "w2": 0.2 * jax.random.normal(ks[4], (cout, cout, 3, 3), jnp.float32),
        "b2": 0.1 * jax.random.normal(ks[5], (cout,), jnp.float32),
        "g2": 1.0 + 0.1 * jax.random.normal(ks[6], (cout,), jnp.float32),
        "bt2": 0.1 * jax.random.normal(ks[7], (cout,), jnp.float32),
    }


if __name__ == "__main__":
    key = jax.random.PRNGKey(0)
    kx, kp = jax.random.split(key)

    N, Cin, Cout, H, W = 2, 4, 8, 16, 16
    x = jax.random.normal(kx, (N, Cin, H, W), jnp.float32)   # PyTorch NCHW input
    params = _init_params(kp, Cin, Cout)

    fwd = jax.jit(downsized_convolution_block)
    out = jax.block_until_ready(fwd(x, params))
    ref = jax.block_until_ready(_reference(x, params))

    assert out.shape == (N, Cout, H // 2, W // 2), out.shape
    max_err = float(jnp.max(jnp.abs(out - ref)))
    assert max_err < 1e-3, f"mismatch vs reference: {max_err}"

    print("KERNEL_OK")
</pallas_src>

<mosaic_0001>
module attributes {stable_mosaic.version = 11 : i64} {
  func.func @_pool_conv1_kernel(%arg0: i32, %arg1: memref<4x4x128xf32, #tpu.memory_space<vmem>>, %arg2: memref<8x36xf32, #tpu.memory_space<vmem>>, %arg3: memref<8x128xf32, #tpu.memory_space<vmem>>, %arg4: memref<1x8x1xf32, #tpu.memory_space<vmem>>, %arg5: memref<1x8x1xf32, #tpu.memory_space<vmem>>, %arg6: memref<4x146xf32, #tpu.memory_space<vmem>>, %arg7: memref<36x128xf32, #tpu.memory_space<vmem>>) attributes {dimension_semantics = [#tpu.dimension_semantics<parallel>], iteration_bounds = array<i64: 1>, scalar_prefetch = 0 : i64, scratch_operands = 2 : i64, tpu.core_type = #tpu.core_type<tc>, window_params = [{transform_indices = @transform_0, window_bounds = array<i64: 4, 4, 128>}, {pipeline_mode = #tpu.pipeline_mode<synchronous>, transform_indices = @transform_1, window_bounds = array<i64: 8, 36>}, {transform_indices = @transform_2, window_bounds = array<i64: 8, 128>}, {transform_indices = @transform_3, window_bounds = array<i64: 1, 8, 1>}, {transform_indices = @transform_4, window_bounds = array<i64: 1, 8, 1>}]} {
    %c0 = arith.constant 0 : index
    %c0_0 = arith.constant 0 : index
    %c0_1 = arith.constant 0 : index
    %0 = vector.load %arg1[%c0, %c0_0, %c0_1] : memref<4x4x128xf32, #tpu.memory_space<vmem>>, vector<1x4x128xf32>
    %1 = vector.shape_cast %0 : vector<1x4x128xf32> to vector<4x128xf32>
    %c1 = arith.constant 1 : index
    %c0_2 = arith.constant 0 : index
    %c0_3 = arith.constant 0 : index
    %2 = vector.load %arg1[%c1, %c0_2, %c0_3] : memref<4x4x128xf32, #tpu.memory_space<vmem>>, vector<1x4x128xf32>
    %3 = vector.shape_cast %2 : vector<1x4x128xf32> to vector<4x128xf32>
    %4 = arith.maximumf %1, %3 : vector<4x128xf32>
    %c2 = arith.constant 2 : index
    %c0_4 = arith.constant 0 : index
    %c0_5 = arith.constant 0 : index
    %5 = vector.load %arg1[%c2, %c0_4, %c0_5] : memref<4x4x128xf32, #tpu.memory_space<vmem>>, vector<1x4x128xf32>
    %6 = vector.shape_cast %5 : vector<1x4x128xf32> to vector<4x128xf32>
    %c3 = arith.constant 3 : index
    %c0_6 = arith.constant 0 : index
    %c0_7 = arith.constant 0 : index
    %7 = vector.load %arg1[%c3, %c0_6, %c0_7] : memref<4x4x128xf32, #tpu.memory_space<vmem>>, vector<1x4x128xf32>
    %8 = vector.shape_cast %7 : vector<1x4x128xf32> to vector<4x128xf32>
    %9 = arith.maximumf %6, %8 : vector<4x128xf32>
    %10 = arith.maximumf %4, %9 : vector<4x128xf32>
    %cst = arith.constant 0.000000e+00 : f32
    %11 = vector.broadcast %cst : f32 to vector<4x9xf32>
    %c0_8 = arith.constant 0 : index
    %c0_9 = arith.constant 0 : index
    %12 = vector.load %arg6[%c0_8, %c0_9] : memref<4x146xf32, #tpu.memory_space<vmem>>, vector<4x9xf32>
    tpu.vector_store %arg6[%c0_8, %c0_9], %11 {strides = array<i32>} : memref<4x146xf32, #tpu.memory_space<vmem>>, vector<4x9xf32>,
    %cst_10 = arith.constant 0.000000e+00 : f32
    %13 = vector.broadcast %cst_10 : f32 to vector<4x9xf32>
    %c0_11 = arith.constant 0 : index
    %c137 = arith.constant 137 : index
    %14 = vector.load %arg6[%c0_11, %c137] : memref<4x146xf32, #tpu.memory_space<vmem>>, vector<4x9xf32>
    tpu.vector_store %arg6[%c0_11, %c137], %13 {strides = array<i32>} : memref<4x146xf32, #tpu.memory_space<vmem>>, vector<4x9xf32>,
    %c0_12 = arith.constant 0 : index
    %c9 = arith.constant 9 : index
    %15 = vector.load %arg6[%c0_12, %c9] : memref<4x146xf32, #tpu.memory_space<vmem>>, vector<4x128xf32>
    tpu.vector_store %arg6[%c0_12, %c9], %10 {strides = array<i32>} : memref<4x146xf32, #tpu.memory_space<vmem>>, vector<4x128xf32>,
    %16 = tpu.iota {dimensions = array<i32: 1>} : vector<1x128xi32>
    %c7_i32 = arith.constant 7 : i32
    %17 = vector.broadcast %c7_i32 : i32 to vector<1x128xi32>
    %18 = arith.andi %16, %17 : vector<1x128xi32>
    %c3_i32 = arith.constant 3 : i32
    %19 = vector.broadcast %c3_i32 : i32 to vector<1x128xi32>
    %20 = arith.shrsi %16, %19 : vector<1x128xi32>
    %c7_i32_13 = arith.constant 7 : i32
    %21 = vector.broadcast %c7_i32_13 : i32 to vector<1x128xi32>
    %22 = arith.andi %20, %21 : vector<1x128xi32>
    %c0_i32 = arith.constant 0 : i32
    %23 = vector.broadcast %c0_i32 : i32 to vector<1x128xi32>
    %24 = arith.cmpi sgt, %22, %23 : vector<1x128xi32>
    %c7_i32_14 = arith.constant 7 : i32
    %25 = vector.broadcast %c7_i32_14 : i32 to vector<1x128xi32>
    %26 = arith.cmpi slt, %22, %25 : vector<1x128xi32>
    %c0_i32_15 = arith.constant 0 : i32
    %27 = vector.broadcast %c0_i32_15 : i32 to vector<1x128xi32>
    %28 = arith.cmpi sgt, %18, %27 : vector<1x128xi32>
    %c7_i32_16 = arith.constant 7 : i32
    %29 = vector.broadcast %c7_i32_16 : i32 to vector<1x128xi32>
    %30 = arith.cmpi slt, %18, %29 : vector<1x128xi32>
    %c0_17 = arith.constant 0 : index
    %c0_18 = arith.constant 0 : index
    %31 = vector.load %arg6[%c0_17, %c0_18] : memref<4x146xf32, #tpu.memory_space<vmem>>, vector<4x128xf32>
    %32 = arith.andi %24, %28 : vector<1x128xi1>
    %cst_19 = arith.constant 0.000000e+00 : f32
    %33 = vector.shape_cast %32 : vector<1x128xi1> to vector<1x128xi1>
    %34 = vector.broadcast %33 : vector<1x128xi1> to vector<4x128xi1>
    %35 = vector.broadcast %cst_19 : f32 to vector<4x128xf32>
    %36 = arith.select %34, %31, %35 : vector<4x128xi1>, vector<4x128xf32>
    %c0_20 = arith.constant 0 : index
    %c0_21 = arith.constant 0 : index
    %37 = vector.load %arg7[%c0_20, %c0_21] : memref<36x128xf32, #tpu.memory_space<vmem>>, vector<4x128xf32>
    tpu.vector_store %arg7[%c0_20, %c0_21], %36 {strides = array<i32>} : memref<36x128xf32, #tpu.memory_space<vmem>>, vector<4x128xf32>,
    %c0_22 = arith.constant 0 : index
    %c1_23 = arith.constant 1 : index
    %38 = vector.load %arg6[%c0_22, %c1_23] : memref<4x146xf32, #tpu.memory_space<vmem>>, vector<4x128xf32>
    %cst_24 = arith.constant 0.000000e+00 : f32
    %39 = vector.shape_cast %24 : vector<1x128xi1> to vector<1x128xi1>
    %40 = vector.broadcast %39 : vector<1x128xi1> to vector<4x128xi1>
    %41 = vector.broadcast %cst_24 : f32 to vector<4x128xf32>
    %42 = arith.select %40, %38, %41 : vector<4x128xi1>, vector<4x128xf32>
    %c4 = arith.constant 4 : index
    %c0_25 = arith.constant 0 : index
    %43 = vector.load %arg7[%c4, %c0_25] : memref<36x128xf32, #tpu.memory_space<vmem>>, vector<4x128xf32>
    tpu.vector_store %arg7[%c4, %c0_25], %42 {strides = array<i32>} : memref<36x128xf32, #tpu.memory_space<vmem>>, vector<4x128xf32>,
    %c0_26 = arith.constant 0 : index
    %c2_27 = arith.constant 2 : index
    %44 = vector.load %arg6[%c0_26, %c2_27] : memref<4x146xf32, #tpu.memory_space<vmem>>, vector<4x128xf32>
    %45 = arith.andi %24, %30 : vector<1x128xi1>
    %cst_28 = arith.constant 0.000000e+00 : f32
    %46 = vector.shape_cast %45 : vector<1x128xi1> to vector<1x128xi1>
    %47 = vector.broadcast %46 : vector<1x128xi1> to vector<4x128xi1>
    %48 = vector.broadcast %cst_28 : f32 to vector<4x128xf32>
    %49 = arith.select %47, %44, %48 : vector<4x128xi1>, vector<4x128xf32>
    %c8 = arith.constant 8 : index
    %c0_29 = arith.constant 0 : index
    %50 = vector.load %arg7[%c8, %c0_29] : memref<36x128xf32, #tpu.memory_space<vmem>>, vector<4x128xf32>
    tpu.vector_store %arg7[%c8, %c0_29], %49 {strides = array<i32>} : memref<36x128xf32, #tpu.memory_space<vmem>>, vector<4x128xf32>,
    %c0_30 = arith.constant 0 : index
    %c8_31 = arith.constant 8 : index
    %51 = vector.load %arg6[%c0_30, %c8_31] : memref<4x146xf32, #tpu.memory_space<vmem>>, vector<4x128xf32>
    %cst_32 = arith.constant 0.000000e+00 : f32
    %52 = vector.shape_cast %28 : vector<1x128xi1> to vector<1x128xi1>
    %53 = vector.broadcast %52 : vector<1x128xi1> to vector<4x128xi1>
    %54 = vector.broadcast %cst_32 : f32 to vector<4x128xf32>
    %55 = arith.select %53, %51, %54 : vector<4x128xi1>, vector<4x128xf32>
    %c12 = arith.constant 12 : index
    %c0_33 = arith.constant 0 : index
    %56 = vector.load %arg7[%c12, %c0_33] : memref<36x128xf32, #tpu.memory_space<vmem>>, vector<4x128xf32>
    tpu.vector_store %arg7[%c12, %c0_33], %55 {strides = array<i32>} : memref<36x128xf32, #tpu.memory_space<vmem>>, vector<4x128xf32>,
    %c0_34 = arith.constant 0 : index
    %c9_35 = arith.constant 9 : index
    %57 = vector.load %arg6[%c0_34, %c9_35] : memref<4x146xf32, #tpu.memory_space<vmem>>, vector<4x128xf32>
    %c16 = arith.constant 16 : index
    %c0_36 = arith.constant 0 : index
    %58 = vector.load %arg7[%c16, %c0_36] : memref<36x128xf32, #tpu.memory_space<vmem>>, vector<4x128xf32>
    tpu.vector_store %arg7[%c16, %c0_36], %57 {strides = array<i32>} : memref<36x128xf32, #tpu.memory_space<vmem>>, vector<4x128xf32>,
    %c0_37 = arith.constant 0 : index
    %c10 = arith.constant 10 : index
    %59 = vector.load %arg6[%c0_37, %c10] : memref<4x146xf32, #tpu.memory_space<vmem>>, vector<4x128xf32>
    %cst_38 = arith.constant 0.000000e+00 : f32
    %60 = vector.shape_cast %30 : vector<1x128xi1> to vector<1x128xi1>
    %61 = vector.broadcast %60 : vector<1x128xi1> to vector<4x128xi1>
    %62 = vector.broadcast %cst_38 : f32 to vector<4x128xf32>
    %63 = arith.select %61, %59, %62 : vector<4x128xi1>, vector<4x128xf32>
    %c20 = arith.constant 20 : index
    %c0_39 = arith.constant 0 : index
    %64 = vector.load %arg7[%c20, %c0_39] : memref<36x128xf32, #tpu.memory_space<vmem>>, vector<4x128xf32>
    tpu.vector_store %arg7[%c20, %c0_39], %63 {strides = array<i32>} : memref<36x128xf32, #tpu.memory_space<vmem>>, vector<4x128xf32>,
    %c0_40 = arith.constant 0 : index
    %c16_41 = arith.constant 16 : index
    %65 = vector.load %arg6[%c0_40, %c16_41] : memref<4x146xf32, #tpu.memory_space<vmem>>, vector<4x128xf32>
    %66 = arith.andi %26, %28 : vector<1x128xi1>
    %cst_42 = arith.constant 0.000000e+00 : f32
    %67 = vector.shape_cast %66 : vector<1x128xi1> to vector<1x128xi1>
    %68 = vector.broadcast %67 : vector<1x128xi1> to vector<4x128xi1>
    %69 = vector.broadcast %cst_42 : f32 to vector<4x128xf32>
    %70 = arith.select %68, %65, %69 : vector<4x128xi1>, vector<4x128xf32>
    %c24 = arith.constant 24 : index
    %c0_43 = arith.constant 0 : index
    %71 = vector.load %arg7[%c24, %c0_43] : memref<36x128xf32, #tpu.memory_space<vmem>>, vector<4x128xf32>
    tpu.vector_store %arg7[%c24, %c0_43], %70 {strides = array<i32>} : memref<36x128xf32, #tpu.memory_space<vmem>>, vector<4x128xf32>,
    %c0_44 = arith.constant 0 : index
    %c17 = arith.constant 17 : index
    %72 = vector.load %arg6[%c0_44, %c17] : memref<4x146xf32, #tpu.memory_space<vmem>>, vector<4x128xf32>
    %cst_45 = arith.constant 0.000000e+00 : f32
    %73 = vector.shape_cast %26 : vector<1x128xi1> to vector<1x128xi1>
    %74 = vector.broadcast %73 : vector<1x128xi1> to vector<4x128xi1>
    %75 = vector.broadcast %cst_45 : f32 to vector<4x128xf32>
    %76 = arith.select %74, %72, %75 : vector<4x128xi1>, vector<4x128xf32>
    %c28 = arith.constant 28 : index
    %c0_46 = arith.constant 0 : index
    %77 = vector.load %arg7[%c28, %c0_46] : memref<36x128xf32, #tpu.memory_space<vmem>>, vector<4x128xf32>
    tpu.vector_store %arg7[%c28, %c0_46], %76 {strides = array<i32>} : memref<36x128xf32, #tpu.memory_space<vmem>>, vector<4x128xf32>,
    %c0_47 = arith.constant 0 : index
    %c18 = arith.constant 18 : index
    %78 = vector.load %arg6[%c0_47, %c18] : memref<4x146xf32, #tpu.memory_space<vmem>>, vector<4x128xf32>
    %79 = arith.andi %26, %30 : vector<1x128xi1>
    %cst_48 = arith.constant 0.000000e+00 : f32
    %80 = vector.shape_cast %79 : vector<1x128xi1> to vector<1x128xi1>
    %81 = vector.broadcast %80 : vector<1x128xi1> to vector<4x128xi1>
    %82 = vector.broadcast %cst_48 : f32 to vector<4x128xf32>
    %83 = arith.select %81, %78, %82 : vector<4x128xi1>, vector<4x128xf32>
    %c32 = arith.constant 32 : index
    %c0_49 = arith.constant 0 : index
    %84 = vector.load %arg7[%c32, %c0_49] : memref<36x128xf32, #tpu.memory_space<vmem>>, vector<4x128xf32>
    tpu.vector_store %arg7[%c32, %c0_49], %83 {strides = array<i32>} : memref<36x128xf32, #tpu.memory_space<vmem>>, vector<4x128xf32>,
    %c0_50 = arith.constant 0 : index
    %c0_51 = arith.constant 0 : index
    %85 = vector.load %arg2[%c0_50, %c0_51] : memref<8x36xf32, #tpu.memory_space<vmem>>, vector<8x36xf32>
    %c0_52 = arith.constant 0 : index
    %c0_53 = arith.constant 0 : index
    %86 = vector.load %arg7[%c0_52, %c0_53] : memref<36x128xf32, #tpu.memory_space<vmem>>, vector<36x128xf32>
    %cst_54 = arith.constant dense<0.000000e+00> : vector<8x128xf32>
    %87 = tpu.matmul %85, %86, %cst_54 {dimension_numbers = #tpu.dot_dimension_numbers<[1], [0], [0], [1], [0, 0, 1, 1], [], []>} : vector<8x36xf32>, vector<36x128xf32>, vector<8x128xf32> -> vector<8x128xf32>
    %c0_55 = arith.constant 0 : index
    %c0_56 = arith.constant 0 : index
    %88 = vector.load %arg3[%c0_55, %c0_56] : memref<8x128xf32, #tpu.memory_space<vmem>>, vector<8x128xf32>
    tpu.vector_store %arg3[%c0_55, %c0_56], %87 {strides = array<i32>} : memref<8x128xf32, #tpu.memory_space<vmem>>, vector<8x128xf32>,
    %cst_57 = arith.constant dense<0.000000e+00> : vector<8xf32>
    %89 = vector.multi_reduction <add>, %87, %cst_57 [1] : vector<8x128xf32> to vector<8xf32>
    %90 = vector.shape_cast %89 : vector<8xf32> to vector<8x1xf32>
    %c0_58 = arith.constant 0 : index
    %c0_59 = arith.constant 0 : index
    %c0_60 = arith.constant 0 : index
    %91 = vector.load %arg4[%c0_58, %c0_59, %c0_60] : memref<1x8x1xf32, #tpu.memory_space<vmem>>, vector<1x8x1xf32>
    %92 = vector.shape_cast %91 : vector<1x8x1xf32> to vector<8x1xf32>
    %93 = vector.shape_cast %90 : vector<8x1xf32> to vector<1x8x1xf32>
    tpu.vector_store %arg4[%c0_58, %c0_59, %c0_60], %93 {strides = array<i32>} : memref<1x8x1xf32, #tpu.memory_space<vmem>>, vector<1x8x1xf32>,
    %94 = arith.mulf %87, %87 : vector<8x128xf32>
    %cst_61 = arith.constant dense<0.000000e+00> : vector<8xf32>
    %95 = vector.multi_reduction <add>, %94, %cst_61 [1] : vector<8x128xf32> to vector<8xf32>
    %96 = vector.shape_cast %95 : vector<8xf32> to vector<8x1xf32>
    %c0_62 = arith.constant 0 : index
    %c0_63 = arith.constant 0 : index
    %c0_64 = arith.constant 0 : index
    %97 = vector.load %arg5[%c0_62, %c0_63, %c0_64] : memref<1x8x1xf32, #tpu.memory_space<vmem>>, vector<1x8x1xf32>
    %98 = vector.shape_cast %97 : vector<1x8x1xf32> to vector<8x1xf32>
    %99 = vector.shape_cast %96 : vector<8x1xf32> to vector<1x8x1xf32>
    tpu.vector_store %arg5[%c0_62, %c0_63, %c0_64], %99 {strides = array<i32>} : memref<1x8x1xf32, #tpu.memory_space<vmem>>, vector<1x8x1xf32>,
    return
  }
  func.func @transform_0(%arg0: i32) -> (i32, i32, i32) {
    %c0_i32 = arith.constant 0 : i32
    %c0_i32_0 = arith.constant 0 : i32
    %c0_i32_1 = arith.constant 0 : i32
    return %c0_i32, %c0_i32_0, %arg0 : i32, i32, i32
  }
  func.func @transform_1(%arg0: i32) -> (i32, i32) {
    %c0_i32 = arith.constant 0 : i32
    %c0_i32_0 = arith.constant 0 : i32
    %c0_i32_1 = arith.constant 0 : i32
    return %c0_i32, %c0_i32_0 : i32, i32
  }
  func.func @transform_2(%arg0: i32) -> (i32, i32) {
    %c0_i32 = arith.constant 0 : i32
    %c0_i32_0 = arith.constant 0 : i32
    return %c0_i32, %arg0 : i32, i32
  }
  func.func @transform_3(%arg0: i32) -> (i32, i32, i32) {
    %c0_i32 = arith.constant 0 : i32
    %c0_i32_0 = arith.constant 0 : i32
    %c0_i32_1 = arith.constant 0 : i32
    return %arg0, %c0_i32, %c0_i32_0 : i32, i32, i32
  }
  func.func @transform_4(%arg0: i32) -> (i32, i32, i32) {
    %c0_i32 = arith.constant 0 : i32
    %c0_i32_0 = arith.constant 0 : i32
    %c0_i32_1 = arith.constant 0 : i32
    return %arg0, %c0_i32, %c0_i32_0 : i32, i32, i32
  }
}

module attributes {stable_mosaic.version = 11 : i64} {
  func.func @_bn_gelu_conv2_kernel(%arg0: i32, %arg1: memref<8x128xf32, #tpu.memory_space<vmem>>, %arg2: memref<8x1xf32, #tpu.memory_space<vmem>>, %arg3: memref<8x1xf32, #tpu.memory_space<vmem>>, %arg4: memref<8x72xf32, #tpu.memory_space<vmem>>, %arg5: memref<8x128xf32, #tpu.memory_space<vmem>>, %arg6: memref<1x8x1xf32, #tpu.memory_space<vmem>>, %arg7: memref<1x8x1xf32, #tpu.memory_space<vmem>>, %arg8: memref<8x146xf32, #tpu.memory_space<vmem>>, %arg9: memref<72x128xf32, #tpu.memory_space<vmem>>) attributes {dimension_semantics = [#tpu.dimension_semantics<parallel>], iteration_bounds = array<i64: 1>, scalar_prefetch = 0 : i64, scratch_operands = 2 : i64, tpu.core_type = #tpu.core_type<tc>, window_params = [{transform_indices = @transform_0, window_bounds = array<i64: 8, 128>}, {pipeline_mode = #tpu.pipeline_mode<synchronous>, transform_indices = @transform_1, window_bounds = array<i64: 8, 1>}, {pipeline_mode = #tpu.pipeline_mode<synchronous>, transform_indices = @transform_2, window_bounds = array<i64: 8, 1>}, {pipeline_mode = #tpu.pipeline_mode<synchronous>, transform_indices = @transform_3, window_bounds = array<i64: 8, 72>}, {transform_indices = @transform_4, window_bounds = array<i64: 8, 128>}, {transform_indices = @transform_5, window_bounds = array<i64: 1, 8, 1>}, {transform_indices = @transform_6, window_bounds = array<i64: 1, 8, 1>}]} {
    %c0 = arith.constant 0 : index
    %c0_0 = arith.constant 0 : index
    %0 = vector.load %arg1[%c0, %c0_0] : memref<8x128xf32, #tpu.memory_space<vmem>>, vector<8x128xf32>
    %c0_1 = arith.constant 0 : index
    %c0_2 = arith.constant 0 : index
    %1 = vector.load %arg2[%c0_1, %c0_2] : memref<8x1xf32, #tpu.memory_space<vmem>>, vector<8x1xf32>
    %2 = vector.broadcast %1 : vector<8x1xf32> to vector<8x128xf32>
    %3 = arith.mulf %0, %2 : vector<8x128xf32>
    %c0_3 = arith.constant 0 : index
    %c0_4 = arith.constant 0 : index
    %4 = vector.load %arg3[%c0_3, %c0_4] : memref<8x1xf32, #tpu.memory_space<vmem>>, vector<8x1xf32>
    %5 = vector.broadcast %4 : vector<8x1xf32> to vector<8x128xf32>
    %6 = arith.addf %3, %5 : vector<8x128xf32>
    %cst = arith.constant 5.000000e-01 : f32
    %7 = vector.broadcast %cst : f32 to vector<8x128xf32>
    %8 = arith.mulf %7, %6 : vector<8x128xf32>
    %cst_5 = arith.constant 0.707106769 : f32
    %9 = vector.broadcast %cst_5 : f32 to vector<8x128xf32>
    %10 = arith.mulf %6, %9 : vector<8x128xf32>
    %11 = math.absf %10 : vector<8x128xf32>
    %cst_6 = arith.constant 0.327591091 : f32
    %12 = vector.broadcast %cst_6 : f32 to vector<8x128xf32>
    %13 = arith.mulf %12, %11 : vector<8x128xf32>
    %cst_7 = arith.constant 1.000000e+00 : f32
    %14 = vector.broadcast %cst_7 : f32 to vector<8x128xf32>
    %15 = arith.addf %14, %13 : vector<8x128xf32>
    %16 = tpu.reciprocal %15 {approx = true} : vector<8x128xf32> -> vector<8x128xf32>
    %17 = arith.mulf %15, %16 : vector<8x128xf32>
    %cst_8 = arith.constant 2.000000e+00 : f32
    %18 = vector.broadcast %cst_8 : f32 to vector<8x128xf32>
    %19 = arith.subf %18, %17 : vector<8x128xf32>
    %20 = arith.mulf %16, %19 : vector<8x128xf32>
    %cst_9 = arith.constant 1.06140542 : f32
    %21 = vector.broadcast %cst_9 : f32 to vector<8x128xf32>
    %22 = arith.mulf %21, %20 : vector<8x128xf32>
    %cst_10 = arith.constant -1.45315206 : f32
    %23 = vector.broadcast %cst_10 : f32 to vector<8x128xf32>
    %24 = arith.addf %22, %23 : vector<8x128xf32>
    %25 = arith.mulf %24, %20 : vector<8x128xf32>
    %cst_11 = arith.constant 1.42141378 : f32
    %26 = vector.broadcast %cst_11 : f32 to vector<8x128xf32>
    %27 = arith.addf %25, %26 : vector<8x128xf32>
    %28 = arith.mulf %27, %20 : vector<8x128xf32>
    %cst_12 = arith.constant -0.284496725 : f32
    %29 = vector.broadcast %cst_12 : f32 to vector<8x128xf32>
    %30 = arith.addf %28, %29 : vector<8x128xf32>
    %31 = arith.mulf %30, %20 : vector<8x128xf32>
    %cst_13 = arith.constant 0.254829586 : f32
    %32 = vector.broadcast %cst_13 : f32 to vector<8x128xf32>
    %33 = arith.addf %31, %32 : vector<8x128xf32>
    %34 = arith.mulf %33, %20 : vector<8x128xf32>
    %cst_14 = arith.constant 0.000000e+00 : f32
    %35 = vector.broadcast %cst_14 : f32 to vector<8x128xf32>
    %36 = arith.subf %35, %11 : vector<8x128xf32>
    %37 = arith.mulf %36, %11 : vector<8x128xf32>
    %38 = math.exp %37 : vector<8x128xf32>
    %39 = arith.mulf %34, %38 : vector<8x128xf32>
    %cst_15 = arith.constant 1.000000e+00 : f32
    %40 = vector.broadcast %cst_15 : f32 to vector<8x128xf32>
    %41 = arith.subf %40, %39 : vector<8x128xf32>
    %cst_16 = arith.constant 0.000000e+00 : f32
    %42 = vector.broadcast %cst_16 : f32 to vector<8x128xf32>
    %43 = arith.cmpf oge, %10, %42 : vector<8x128xf32>
    %cst_17 = arith.constant 0.000000e+00 : f32
    %44 = vector.broadcast %cst_17 : f32 to vector<8x128xf32>
    %45 = arith.subf %44, %41 : vector<8x128xf32>
    %46 = arith.select %43, %41, %45 : vector<8x128xi1>, vector<8x128xf32>
    %cst_18 = arith.constant 1.000000e+00 : f32
    %47 = vector.broadcast %cst_18 : f32 to vector<8x128xf32>
    %48 = arith.addf %47, %46 : vector<8x128xf32>
    %49 = arith.mulf %8, %48 : vector<8x128xf32>
    %cst_19 = arith.constant 0.000000e+00 : f32
    %50 = vector.broadcast %cst_19 : f32 to vector<8x9xf32>
    %c0_20 = arith.constant 0 : index
    %c0_21 = arith.constant 0 : index
    %51 = vector.load %arg8[%c0_20, %c0_21] : memref<8x146xf32, #tpu.memory_space<vmem>>, vector<8x9xf32>
    tpu.vector_store %arg8[%c0_20, %c0_21], %50 {strides = array<i32>} : memref<8x146xf32, #tpu.memory_space<vmem>>, vector<8x9xf32>,
    %cst_22 = arith.constant 0.000000e+00 : f32
    %52 = vector.broadcast %cst_22 : f32 to vector<8x9xf32>
    %c0_23 = arith.constant 0 : index
    %c137 = arith.constant 137 : index
    %53 = vector.load %arg8[%c0_23, %c137] : memref<8x146xf32, #tpu.memory_space<vmem>>, vector<8x9xf32>
    tpu.vector_store %arg8[%c0_23, %c137], %52 {strides = array<i32>} : memref<8x146xf32, #tpu.memory_space<vmem>>, vector<8x9xf32>,
    %c0_24 = arith.constant 0 : index
    %c9 = arith.constant 9 : index
    %54 = vector.load %arg8[%c0_24, %c9] : memref<8x146xf32, #tpu.memory_space<vmem>>, vector<8x128xf32>
    tpu.vector_store %arg8[%c0_24, %c9], %49 {strides = array<i32>} : memref<8x146xf32, #tpu.memory_space<vmem>>, vector<8x128xf32>,
    %55 = tpu.iota {dimensions = array<i32: 1>} : vector<1x128xi32>
    %c7_i32 = arith.constant 7 : i32
    %56 = vector.broadcast %c7_i32 : i32 to vector<1x128xi32>
    %57 = arith.andi %55, %56 : vector<1x128xi32>
    %c3_i32 = arith.constant 3 : i32
    %58 = vector.broadcast %c3_i32 : i32 to vector<1x128xi32>
    %59 = arith.shrsi %55, %58 : vector<1x128xi32>
    %c7_i32_25 = arith.constant 7 : i32
    %60 = vector.broadcast %c7_i32_25 : i32 to vector<1x128xi32>
    %61 = arith.andi %59, %60 : vector<1x128xi32>
    %c0_i32 = arith.constant 0 : i32
    %62 = vector.broadcast %c0_i32 : i32 to vector<1x128xi32>
    %63 = arith.cmpi sgt, %61, %62 : vector<1x128xi32>
    %c7_i32_26 = arith.constant 7 : i32
    %64 = vector.broadcast %c7_i32_26 : i32 to vector<1x128xi32>
    %65 = arith.cmpi slt, %61, %64 : vector<1x128xi32>
    %c0_i32_27 = arith.constant 0 : i32
    %66 = vector.broadcast %c0_i32_27 : i32 to vector<1x128xi32>
    %67 = arith.cmpi sgt, %57, %66 : vector<1x128xi32>
    %c7_i32_28 = arith.constant 7 : i32
    %68 = vector.broadcast %c7_i32_28 : i32 to vector<1x128xi32>
    %69 = arith.cmpi slt, %57, %68 : vector<1x128xi32>
    %c0_29 = arith.constant 0 : index
    %c0_30 = arith.constant 0 : index
    %70 = vector.load %arg8[%c0_29, %c0_30] : memref<8x146xf32, #tpu.memory_space<vmem>>, vector<8x128xf32>
    %71 = arith.andi %63, %67 : vector<1x128xi1>
    %cst_31 = arith.constant 0.000000e+00 : f32
    %72 = vector.shape_cast %71 : vector<1x128xi1> to vector<1x128xi1>
    %73 = vector.broadcast %72 : vector<1x128xi1> to vector<8x128xi1>
    %74 = vector.broadcast %cst_31 : f32 to vector<8x128xf32>
    %75 = arith.select %73, %70, %74 : vector<8x128xi1>, vector<8x128xf32>
    %c0_32 = arith.constant 0 : index
    %c0_33 = arith.constant 0 : index
    %76 = vector.load %arg9[%c0_32, %c0_33] : memref<72x128xf32, #tpu.memory_space<vmem>>, vector<8x128xf32>
    tpu.vector_store %arg9[%c0_32, %c0_33], %75 {strides = array<i32>} : memref<72x128xf32, #tpu.memory_space<vmem>>, vector<8x128xf32>,
    %c0_34 = arith.constant 0 : index
    %c1 = arith.constant 1 : index
    %77 = vector.load %arg8[%c0_34, %c1] : memref<8x146xf32, #tpu.memory_space<vmem>>, vector<8x128xf32>
    %cst_35 = arith.constant 0.000000e+00 : f32
    %78 = vector.shape_cast %63 : vector<1x128xi1> to vector<1x128xi1>
    %79 = vector.broadcast %78 : vector<1x128xi1> to vector<8x128xi1>
    %80 = vector.broadcast %cst_35 : f32 to vector<8x128xf32>
    %81 = arith.select %79, %77, %80 : vector<8x128xi1>, vector<8x128xf32>
    %c8 = arith.constant 8 : index
    %c0_36 = arith.constant 0 : index
    %82 = vector.load %arg9[%c8, %c0_36] : memref<72x128xf32, #tpu.memory_space<vmem>>, vector<8x128xf32>
    tpu.vector_store %arg9[%c8, %c0_36], %81 {strides = array<i32>} : memref<72x128xf32, #tpu.memory_space<vmem>>, vector<8x128xf32>,
    %c0_37 = arith.constant 0 : index
    %c2 = arith.constant 2 : index
    %83 = vector.load %arg8[%c0_37, %c2] : memref<8x146xf32, #tpu.memory_space<vmem>>, vector<8x128xf32>
    %84 = arith.andi %63, %69 : vector<1x128xi1>
    %cst_38 = arith.constant 0.000000e+00 : f32
    %85 = vector.shape_cast %84 : vector<1x128xi1> to vector<1x128xi1>
    %86 = vector.broadcast %85 : vector<1x128xi1> to vector<8x128xi1>
    %87 = vector.broadcast %cst_38 : f32 to vector<8x128xf32>
    %88 = arith.select %86, %83, %87 : vector<8x128xi1>, vector<8x128xf32>
    %c16 = arith.constant 16 : index
    %c0_39 = arith.constant 0 : index
    %89 = vector.load %arg9[%c16, %c0_39] : memref<72x128xf32, #tpu.memory_space<vmem>>, vector<8x128xf32>
    tpu.vector_store %arg9[%c16, %c0_39], %88 {strides = array<i32>} : memref<72x128xf32, #tpu.memory_space<vmem>>, vector<8x128xf32>,
    %c0_40 = arith.constant 0 : index
    %c8_41 = arith.constant 8 : index
    %90 = vector.load %arg8[%c0_40, %c8_41] : memref<8x146xf32, #tpu.memory_space<vmem>>, vector<8x128xf32>
    %cst_42 = arith.constant 0.000000e+00 : f32
    %91 = vector.shape_cast %67 : vector<1x128xi1> to vector<1x128xi1>
    %92 = vector.broadcast %91 : vector<1x128xi1> to vector<8x128xi1>
    %93 = vector.broadcast %cst_42 : f32 to vector<8x128xf32>
    %94 = arith.select %92, %90, %93 : vector<8x128xi1>, vector<8x128xf32>
    %c24 = arith.constant 24 : index
    %c0_43 = arith.constant 0 : index
    %95 = vector.load %arg9[%c24, %c0_43] : memref<72x128xf32, #tpu.memory_space<vmem>>, vector<8x128xf32>
    tpu.vector_store %arg9[%c24, %c0_43], %94 {strides = array<i32>} : memref<72x128xf32, #tpu.memory_space<vmem>>, vector<8x128xf32>,
    %c0_44 = arith.constant 0 : index
    %c9_45 = arith.constant 9 : index
    %96 = vector.load %arg8[%c0_44, %c9_45] : memref<8x146xf32, #tpu.memory_space<vmem>>, vector<8x128xf32>
    %c32 = arith.constant 32 : index
    %c0_46 = arith.constant 0 : index
    %97 = vector.load %arg9[%c32, %c0_46] : memref<72x128xf32, #tpu.memory_space<vmem>>, vector<8x128xf32>
    tpu.vector_store %arg9[%c32, %c0_46], %96 {strides = array<i32>} : memref<72x128xf32, #tpu.memory_space<vmem>>, vector<8x128xf32>,
    %c0_47 = arith.constant 0 : index
    %c10 = arith.constant 10 : index
    %98 = vector.load %arg8[%c0_47, %c10] : memref<8x146xf32, #tpu.memory_space<vmem>>, vector<8x128xf32>
    %cst_48 = arith.constant 0.000000e+00 : f32
    %99 = vector.shape_cast %69 : vector<1x128xi1> to vector<1x128xi1>
    %100 = vector.broadcast %99 : vector<1x128xi1> to vector<8x128xi1>
    %101 = vector.broadcast %cst_48 : f32 to vector<8x128xf32>
    %102 = arith.select %100, %98, %101 : vector<8x128xi1>, vector<8x128xf32>
    %c40 = arith.constant 40 : index
    %c0_49 = arith.constant 0 : index
    %103 = vector.load %arg9[%c40, %c0_49] : memref<72x128xf32, #tpu.memory_space<vmem>>, vector<8x128xf32>
    tpu.vector_store %arg9[%c40, %c0_49], %102 {strides = array<i32>} : memref<72x128xf32, #tpu.memory_space<vmem>>, vector<8x128xf32>,
    %c0_50 = arith.constant 0 : index
    %c16_51 = arith.constant 16 : index
    %104 = vector.load %arg8[%c0_50, %c16_51] : memref<8x146xf32, #tpu.memory_space<vmem>>, vector<8x128xf32>
    %105 = arith.andi %65, %67 : vector<1x128xi1>
    %cst_52 = arith.constant 0.000000e+00 : f32
    %106 = vector.shape_cast %105 : vector<1x128xi1> to vector<1x128xi1>
    %107 = vector.broadcast %106 : vector<1x128xi1> to vector<8x128xi1>
    %108 = vector.broadcast %cst_52 : f32 to vector<8x128xf32>
    %109 = arith.select %107, %104, %108 : vector<8x128xi1>, vector<8x128xf32>
    %c48 = arith.constant 48 : index
    %c0_53 = arith.constant 0 : index
    %110 = vector.load %arg9[%c48, %c0_53] : memref<72x128xf32, #tpu.memory_space<vmem>>, vector<8x128xf32>
    tpu.vector_store %arg9[%c48, %c0_53], %109 {strides = array<i32>} : memref<72x128xf32, #tpu.memory_space<vmem>>, vector<8x128xf32>,
    %c0_54 = arith.constant 0 : index
    %c17 = arith.constant 17 : index
    %111 = vector.load %arg8[%c0_54, %c17] : memref<8x146xf32, #tpu.memory_space<vmem>>, vector<8x128xf32>
    %cst_55 = arith.constant 0.000000e+00 : f32
    %112 = vector.shape_cast %65 : vector<1x128xi1> to vector<1x128xi1>
    %113 = vector.broadcast %112 : vector<1x128xi1> to vector<8x128xi1>
    %114 = vector.broadcast %cst_55 : f32 to vector<8x128xf32>
    %115 = arith.select %113, %111, %114 : vector<8x128xi1>, vector<8x128xf32>
    %c56 = arith.constant 56 : index
    %c0_56 = arith.constant 0 : index
    %116 = vector.load %arg9[%c56, %c0_56] : memref<72x128xf32, #tpu.memory_space<vmem>>, vector<8x128xf32>
    tpu.vector_store %arg9[%c56, %c0_56], %115 {strides = array<i32>} : memref<72x128xf32, #tpu.memory_space<vmem>>, vector<8x128xf32>,
    %c0_57 = arith.constant 0 : index
    %c18 = arith.constant 18 : index
    %117 = vector.load %arg8[%c0_57, %c18] : memref<8x146xf32, #tpu.memory_space<vmem>>, vector<8x128xf32>
    %118 = arith.andi %65, %69 : vector<1x128xi1>
    %cst_58 = arith.constant 0.000000e+00 : f32
    %119 = vector.shape_cast %118 : vector<1x128xi1> to vector<1x128xi1>
    %120 = vector.broadcast %119 : vector<1x128xi1> to vector<8x128xi1>
    %121 = vector.broadcast %cst_58 : f32 to vector<8x128xf32>
    %122 = arith.select %120, %117, %121 : vector<8x128xi1>, vector<8x128xf32>
    %c64 = arith.constant 64 : index
    %c0_59 = arith.constant 0 : index
    %123 = vector.load %arg9[%c64, %c0_59] : memref<72x128xf32, #tpu.memory_space<vmem>>, vector<8x128xf32>
    tpu.vector_store %arg9[%c64, %c0_59], %122 {strides = array<i32>} : memref<72x128xf32, #tpu.memory_space<vmem>>, vector<8x128xf32>,
    %c0_60 = arith.constant 0 : index
    %c0_61 = arith.constant 0 : index
    %124 = vector.load %arg4[%c0_60, %c0_61] : memref<8x72xf32, #tpu.memory_space<vmem>>, vector<8x72xf32>
    %c0_62 = arith.constant 0 : index
    %c0_63 = arith.constant 0 : index
    %125 = vector.load %arg9[%c0_62, %c0_63] : memref<72x128xf32, #tpu.memory_space<vmem>>, vector<72x128xf32>
    %cst_64 = arith.constant dense<0.000000e+00> : vector<8x128xf32>
    %126 = tpu.matmul %124, %125, %cst_64 {dimension_numbers = #tpu.dot_dimension_numbers<[1], [0], [0], [1], [0, 0, 1, 1], [], []>} : vector<8x72xf32>, vector<72x128xf32>, vector<8x128xf32> -> vector<8x128xf32>
    %c0_65 = arith.constant 0 : index
    %c0_66 = arith.constant 0 : index
    %127 = vector.load %arg5[%c0_65, %c0_66] : memref<8x128xf32, #tpu.memory_space<vmem>>, vector<8x128xf32>
    tpu.vector_store %arg5[%c0_65, %c0_66], %126 {strides = array<i32>} : memref<8x128xf32, #tpu.memory_space<vmem>>, vector<8x128xf32>,
    %cst_67 = arith.constant dense<0.000000e+00> : vector<8xf32>
    %128 = vector.multi_reduction <add>, %126, %cst_67 [1] : vector<8x128xf32> to vector<8xf32>
    %129 = vector.shape_cast %128 : vector<8xf32> to vector<8x1xf32>
    %c0_68 = arith.constant 0 : index
    %c0_69 = arith.constant 0 : index
    %c0_70 = arith.constant 0 : index
    %130 = vector.load %arg6[%c0_68, %c0_69, %c0_70] : memref<1x8x1xf32, #tpu.memory_space<vmem>>, vector<1x8x1xf32>
    %131 = vector.shape_cast %130 : vector<1x8x1xf32> to vector<8x1xf32>
    %132 = vector.shape_cast %129 : vector<8x1xf32> to vector<1x8x1xf32>
    tpu.vector_store %arg6[%c0_68, %c0_69, %c0_70], %132 {strides = array<i32>} : memref<1x8x1xf32, #tpu.memory_space<vmem>>, vector<1x8x1xf32>,
    %133 = arith.mulf %126, %126 : vector<8x128xf32>
    %cst_71 = arith.constant dense<0.000000e+00> : vector<8xf32>
    %134 = vector.multi_reduction <add>, %133, %cst_71 [1] : vector<8x128xf32> to vector<8xf32>
    %135 = vector.shape_cast %134 : vector<8xf32> to vector<8x1xf32>
    %c0_72 = arith.constant 0 : index
    %c0_73 = arith.constant 0 : index
    %c0_74 = arith.constant 0 : index
    %136 = vector.load %arg7[%c0_72, %c0_73, %c0_74] : memref<1x8x1xf32, #tpu.memory_space<vmem>>, vector<1x8x1xf32>
    %137 = vector.shape_cast %136 : vector<1x8x1xf32> to vector<8x1xf32>
    %138 = vector.shape_cast %135 : vector<8x1xf32> to vector<1x8x1xf32>
    tpu.vector_store %arg7[%c0_72, %c0_73, %c0_74], %138 {strides = array<i32>} : memref<1x8x1xf32, #tpu.memory_space<vmem>>, vector<1x8x1xf32>,
    return
  }
  func.func @transform_0(%arg0: i32) -> (i32, i32) {
    %c0_i32 = arith.constant 0 : i32
    %c0_i32_0 = arith.constant 0 : i32
    return %c0_i32, %arg0 : i32, i32
  }
  func.func @transform_1(%arg0: i32) -> (i32, i32) {
    %c0_i32 = arith.constant 0 : i32
    %c0_i32_0 = arith.constant 0 : i32
    %c0_i32_1 = arith.constant 0 : i32
    return %c0_i32, %c0_i32_0 : i32, i32
  }
  func.func @transform_2(%arg0: i32) -> (i32, i32) {
    %c0_i32 = arith.constant 0 : i32
    %c0_i32_0 = arith.constant 0 : i32
    %c0_i32_1 = arith.constant 0 : i32
    return %c0_i32, %c0_i32_0 : i32, i32
  }
  func.func @transform_3(%arg0: i32) -> (i32, i32) {
    %c0_i32 = arith.constant 0 : i32
    %c0_i32_0 = arith.constant 0 : i32
    %c0_i32_1 = arith.constant 0 : i32
    return %c0_i32, %c0_i32_0 : i32, i32
  }
  func.func @transform_4(%arg0: i32) -> (i32, i32) {
    %c0_i32 = arith.constant 0 : i32
    %c0_i32_0 = arith.constant 0 : i32
    return %c0_i32, %arg0 : i32, i32
  }
  func.func @transform_5(%arg0: i32) -> (i32, i32, i32) {
    %c0_i32 = arith.constant 0 : i32
    %c0_i32_0 = arith.constant 0 : i32
    %c0_i32_1 = arith.constant 0 : i32
    return %arg0, %c0_i32, %c0_i32_0 : i32, i32, i32
  }
  func.func @transform_6(%arg0: i32) -> (i32, i32, i32) {
    %c0_i32 = arith.constant 0 : i32
    %c0_i32_0 = arith.constant 0 : i32
    %c0_i32_1 = arith.constant 0 : i32
    return %arg0, %c0_i32, %c0_i32_0 : i32, i32, i32
  }
}

module attributes {stable_mosaic.version = 11 : i64} {
  func.func @_bn_gelu_kernel(%arg0: i32, %arg1: memref<8x128xf32, #tpu.memory_space<vmem>>, %arg2: memref<8x1xf32, #tpu.memory_space<vmem>>, %arg3: memref<8x1xf32, #tpu.memory_space<vmem>>, %arg4: memref<8x128xf32, #tpu.memory_space<vmem>>) attributes {dimension_semantics = [#tpu.dimension_semantics<parallel>], iteration_bounds = array<i64: 1>, scalar_prefetch = 0 : i64, scratch_operands = 0 : i64, tpu.core_type = #tpu.core_type<tc>, window_params = [{transform_indices = @transform_0, window_bounds = array<i64: 8, 128>}, {pipeline_mode = #tpu.pipeline_mode<synchronous>, transform_indices = @transform_1, window_bounds = array<i64: 8, 1>}, {pipeline_mode = #tpu.pipeline_mode<synchronous>, transform_indices = @transform_2, window_bounds = array<i64: 8, 1>}, {transform_indices = @transform_3, window_bounds = array<i64: 8, 128>}]} {
    %c0 = arith.constant 0 : index
    %c0_0 = arith.constant 0 : index
    %0 = vector.load %arg1[%c0, %c0_0] : memref<8x128xf32, #tpu.memory_space<vmem>>, vector<8x128xf32>
    %c0_1 = arith.constant 0 : index
    %c0_2 = arith.constant 0 : index
    %1 = vector.load %arg2[%c0_1, %c0_2] : memref<8x1xf32, #tpu.memory_space<vmem>>, vector<8x1xf32>
    %2 = vector.broadcast %1 : vector<8x1xf32> to vector<8x128xf32>
    %3 = arith.mulf %0, %2 : vector<8x128xf32>
    %c0_3 = arith.constant 0 : index
    %c0_4 = arith.constant 0 : index
    %4 = vector.load %arg3[%c0_3, %c0_4] : memref<8x1xf32, #tpu.memory_space<vmem>>, vector<8x1xf32>
    %5 = vector.broadcast %4 : vector<8x1xf32> to vector<8x128xf32>
    %6 = arith.addf %3, %5 : vector<8x128xf32>
    %cst = arith.constant 5.000000e-01 : f32
    %7 = vector.broadcast %cst : f32 to vector<8x128xf32>
    %8 = arith.mulf %7, %6 : vector<8x128xf32>
    %cst_5 = arith.constant 0.707106769 : f32
    %9 = vector.broadcast %cst_5 : f32 to vector<8x128xf32>
    %10 = arith.mulf %6, %9 : vector<8x128xf32>
    %11 = math.absf %10 : vector<8x128xf32>
    %cst_6 = arith.constant 0.327591091 : f32
    %12 = vector.broadcast %cst_6 : f32 to vector<8x128xf32>
    %13 = arith.mulf %12, %11 : vector<8x128xf32>
    %cst_7 = arith.constant 1.000000e+00 : f32
    %14 = vector.broadcast %cst_7 : f32 to vector<8x128xf32>
    %15 = arith.addf %14, %13 : vector<8x128xf32>
    %16 = tpu.reciprocal %15 {approx = true} : vector<8x128xf32> -> vector<8x128xf32>
    %17 = arith.mulf %15, %16 : vector<8x128xf32>
    %cst_8 = arith.constant 2.000000e+00 : f32
    %18 = vector.broadcast %cst_8 : f32 to vector<8x128xf32>
    %19 = arith.subf %18, %17 : vector<8x128xf32>
    %20 = arith.mulf %16, %19 : vector<8x128xf32>
    %cst_9 = arith.constant 1.06140542 : f32
    %21 = vector.broadcast %cst_9 : f32 to vector<8x128xf32>
    %22 = arith.mulf %21, %20 : vector<8x128xf32>
    %cst_10 = arith.constant -1.45315206 : f32
    %23 = vector.broadcast %cst_10 : f32 to vector<8x128xf32>
    %24 = arith.addf %22, %23 : vector<8x128xf32>
    %25 = arith.mulf %24, %20 : vector<8x128xf32>
    %cst_11 = arith.constant 1.42141378 : f32
    %26 = vector.broadcast %cst_11 : f32 to vector<8x128xf32>
    %27 = arith.addf %25, %26 : vector<8x128xf32>
    %28 = arith.mulf %27, %20 : vector<8x128xf32>
    %cst_12 = arith.constant -0.284496725 : f32
    %29 = vector.broadcast %cst_12 : f32 to vector<8x128xf32>
    %30 = arith.addf %28, %29 : vector<8x128xf32>
    %31 = arith.mulf %30, %20 : vector<8x128xf32>
    %cst_13 = arith.constant 0.254829586 : f32
    %32 = vector.broadcast %cst_13 : f32 to vector<8x128xf32>
    %33 = arith.addf %31, %32 : vector<8x128xf32>
    %34 = arith.mulf %33, %20 : vector<8x128xf32>
    %cst_14 = arith.constant 0.000000e+00 : f32
    %35 = vector.broadcast %cst_14 : f32 to vector<8x128xf32>
    %36 = arith.subf %35, %11 : vector<8x128xf32>
    %37 = arith.mulf %36, %11 : vector<8x128xf32>
    %38 = math.exp %37 : vector<8x128xf32>
    %39 = arith.mulf %34, %38 : vector<8x128xf32>
    %cst_15 = arith.constant 1.000000e+00 : f32
    %40 = vector.broadcast %cst_15 : f32 to vector<8x128xf32>
    %41 = arith.subf %40, %39 : vector<8x128xf32>
    %cst_16 = arith.constant 0.000000e+00 : f32
    %42 = vector.broadcast %cst_16 : f32 to vector<8x128xf32>
    %43 = arith.cmpf oge, %10, %42 : vector<8x128xf32>
    %cst_17 = arith.constant 0.000000e+00 : f32
    %44 = vector.broadcast %cst_17 : f32 to vector<8x128xf32>
    %45 = arith.subf %44, %41 : vector<8x128xf32>
    %46 = arith.select %43, %41, %45 : vector<8x128xi1>, vector<8x128xf32>
    %cst_18 = arith.constant 1.000000e+00 : f32
    %47 = vector.broadcast %cst_18 : f32 to vector<8x128xf32>
    %48 = arith.addf %47, %46 : vector<8x128xf32>
    %49 = arith.mulf %8, %48 : vector<8x128xf32>
    %c0_19 = arith.constant 0 : index
    %c0_20 = arith.constant 0 : index
    %50 = vector.load %arg4[%c0_19, %c0_20] : memref<8x128xf32, #tpu.memory_space<vmem>>, vector<8x128xf32>
    tpu.vector_store %arg4[%c0_19, %c0_20], %49 {strides = array<i32>} : memref<8x128xf32, #tpu.memory_space<vmem>>, vector<8x128xf32>,
    return
  }
  func.func @transform_0(%arg0: i32) -> (i32, i32) {
    %c0_i32 = arith.constant 0 : i32
    %c0_i32_0 = arith.constant 0 : i32
    return %c0_i32, %arg0 : i32, i32
  }
  func.func @transform_1(%arg0: i32) -> (i32, i32) {
    %c0_i32 = arith.constant 0 : i32
    %c0_i32_0 = arith.constant 0 : i32
    %c0_i32_1 = arith.constant 0 : i32
    return %c0_i32, %c0_i32_0 : i32, i32
  }
  func.func @transform_2(%arg0: i32) -> (i32, i32) {
    %c0_i32 = arith.constant 0 : i32
    %c0_i32_0 = arith.constant 0 : i32
    %c0_i32_1 = arith.constant 0 : i32
    return %c0_i32, %c0_i32_0 : i32, i32
  }
  func.func @transform_3(%arg0: i32) -> (i32, i32) {
    %c0_i32 = arith.constant 0 : i32
    %c0_i32_0 = arith.constant 0 : i32
    return %c0_i32, %arg0 : i32, i32
  }
}

</mosaic_0001>

<llo_original>
// kernel: downsized_convolution_block.5
$region0: #{downsized_convolution_block.5}
  #allocation0 [shape = 'u32[]', space=smem, size = 0x4, offset = 0x4, fixed_abs, tag = 'smem constant byte address 0x4 - core index']
  #allocation1 [shape = 'u32[144,128]{1,0:T(1,128)}', space=vmem, size = 0x12000, scoped, tag = 'internal scratch']
  %s0 = inlined_call_operand.vmem [shape: f32[8,128], index: 0, kind: input, shape index: {}]
  %s1 = inlined_call_operand.vmem [shape: f32[8,1], index: 1, kind: input, shape index: {}]
  %s2 = inlined_call_operand.vmem [shape: f32[8,1], index: 2, kind: input, shape index: {}]
  %s3 = inlined_call_operand.vmem [shape: f32[8,128], index: 3, kind: output, shape index: {}]
  %s4 = sld [smem:[#allocation0]]
  $region22: #{downsized_convolution_block.5} parent=0
    _
  %s6 = ssub.s32 1, %s4
  %s7 = scalar_select 0, %s6, %s4
  // Predicated region
  $region2: #{downsized_convolution_block.5} parent=0 // pred_check
    _
  $region3: #{downsized_convolution_block.5} parent=0 // pred_check_branch
    %9 = sbr.rel (0) target = $region5
  $region4: #{downsized_convolution_block.5} parent=0 // pred_region
    _
  $region5: #{downsized_convolution_block.5} parent=0 // pred_fallthru
    _
  // Predicated region
  $region6: #{downsized_convolution_block.5} parent=0 // pred_check
    _
  $region7: #{downsized_convolution_block.5} parent=0 // pred_check_branch
    %11 = sbr.rel (0) target = $region9
  $region8: #{downsized_convolution_block.5} parent=0 // pred_region
    _
  $region9: #{downsized_convolution_block.5} parent=0 // pred_fallthru
    _
  // Predicated region
  $region10: #{downsized_convolution_block.5} parent=0 // pred_check
    _
  $region11: #{downsized_convolution_block.5} parent=0 // pred_check_branch
    %13 = sbr.rel (0) target = $region13
  $region12: #{downsized_convolution_block.5} parent=0 // pred_region
    _
  $region13: #{downsized_convolution_block.5} parent=0 // pred_fallthru
    _
  %v14 = vld [vmem:[%s0] sm:$0xff]
  %v15 = vld [vmem:[%s1] sm:$0xff]
  %17 = vset.pattern.permute.xlu0 0
  %18 = vperm.xlu0 %17, %v15
  %v19 = vpop.permute.xlu0 %18
  %v21 = vmul.f32 %v14, %v19
  %v22 = vld [vmem:[%s2] sm:$0xff]
  %24 = vset.pattern.permute.xlu0 0
  %25 = vperm.xlu0 %24, %v22
  %v26 = vpop.permute.xlu0 %25
  %v28 = vadd.f32 %v21, %v26
  %v29 = vmul.f32 %v28, 0.5
  %v30 = vmul.f32 %v28, 0.70710677
  %v31 = vand.u32 2147483647, %v30
  %v32 = vmul.f32 %v31, 0.3275911
  %v33 = vadd.f32 %v32, 1.0
  %v34 = vrcp.pop %v33
  %v35 = vmul.f32 %v33, %v34
  %v36 = vsub.f32 2.0, %v35
  %v37 = vmul.f32 %v34, %v36
  %v38 = vmul.f32 %v37, 1.0614054
  %v39 = vadd.f32 %v38, -1.4531521
  %v40 = vmul.f32 %v39, %v37
  %v41 = vadd.f32 %v40, 1.4214138
  %v42 = vmul.f32 %v41, %v37
  %v43 = vadd.f32 %v42, -0.28449672
  %v44 = vmul.f32 %v43, %v37
  %v45 = vadd.f32 %v44, 0.2548296
  %v46 = vmul.f32 %v45, %v37
  %v47 = vsub.f32 0.0, %v31
  %v48 = vmul.f32 %v47, %v31
  %v49 = vmul.f32 %v48, 1.442695
  %v50 = vpow.pop %v49
  %v51 = vmul.f32 %v46, %v50
  %v52 = vsub.f32 1.0, %v51
  %vm53 = vcmp.ge.f32.partialorder %v30, 0.0
  %v54 = vsub.f32 0.0, %v52
  %v55 = vsel %vm53, %v52, %v54
  %v56 = vadd.f32 %v55, 1.0
  %v57 = vmul.f32 %v29, %v56
  %58 = vst [vmem:[%s3] sm:$0xff] %v57
  // Predicated region
  $region14: #{downsized_convolution_block.5} parent=0 // pred_check
    _
  $region15: #{downsized_convolution_block.5} parent=0 // pred_check_branch
    %60 = sbr.rel (0) target = $region17
  $region16: #{downsized_convolution_block.5} parent=0 // pred_region
    _
  $region17: #{downsized_convolution_block.5} parent=0 // pred_fallthru
    _
  // Predicated region
  $region18: #{downsized_convolution_block.5} parent=0 // pred_check
    _
  $region19: #{downsized_convolution_block.5} parent=0 // pred_check_branch
    %62 = sbr.rel (0) target = $region21
  $region20: #{downsized_convolution_block.5} parent=0 // pred_region
    _
  $region21: #{downsized_convolution_block.5} parent=0 // pred_fallthru
    _

// kernel: downsized_convolution_block.3
$region0: #{downsized_convolution_block.3}
  #allocation0 [shape = 'u32[]', space=smem, size = 0x4, offset = 0x4, fixed_abs, tag = 'smem constant byte address 0x4 - core index']
  #allocation1 [shape = 'u32[144,128]{1,0:T(1,128)}', space=vmem, size = 0x12000, scoped, tag = 'internal scratch']
  #allocation2 [shape = 'f32[4,146]{1,0:T(4,128)}', space=vmem, size = 0x1000, scoped, tag = 'scratch operand']
  #allocation3 [shape = 'f32[36,128]{1,0:T(8,128)}', space=vmem, size = 0x5000, scoped, tag = 'scratch operand']
  %s0 = inlined_call_operand.vmem [shape: f32[4,4,128], index: 0, kind: input, shape index: {}]
  %s1 = inlined_call_operand.vmem [shape: f32[8,36], index: 1, kind: input, shape index: {}]
  %s2 = inlined_call_operand.vmem [shape: f32[8,128], index: 2, kind: output, shape index: {0}]
  %s3 = inlined_call_operand.vmem [shape: f32[1,8,1], index: 3, kind: output, shape index: {1}]
  %s4 = inlined_call_operand.vmem [shape: f32[1,8,1], index: 4, kind: output, shape index: {2}]
  %5 = xla_tuple %s2, %s3, %s4
  %s6 = sld [smem:[#allocation0]]
  $region34: #{downsized_convolution_block.3} parent=0
    _
  %s8 = ssub.s32 1, %s6
  %s9 = scalar_select 0, %s8, %s6
  // Predicated region
  $region2: #{downsized_convolution_block.3} parent=0 // pred_check
    _
  $region3: #{downsized_convolution_block.3} parent=0 // pred_check_branch
    %11 = sbr.rel (0) target = $region5
  $region4: #{downsized_convolution_block.3} parent=0 // pred_region
    _
  $region5: #{downsized_convolution_block.3} parent=0 // pred_fallthru
    _
  // Predicated region
  $region6: #{downsized_convolution_block.3} parent=0 // pred_check
    _
  $region7: #{downsized_convolution_block.3} parent=0 // pred_check_branch
    %13 = sbr.rel (0) target = $region9
  $region8: #{downsized_convolution_block.3} parent=0 // pred_region
    _
  $region9: #{downsized_convolution_block.3} parent=0 // pred_fallthru
    _
  %v14 = vld [vmem:[%s0] sm:$0xf]
  %s15 = scalar_lea.vmem %s0, 4
  %v16 = vld [vmem:[%s15] sm:$0xf]
  %v17 = vmax.f32 %v14, %v16
  %s18 = scalar_lea.vmem %s0, 8
  %v19 = vld [vmem:[%s18] sm:$0xf]
  %s20 = scalar_lea.vmem %s0, 12
  %v21 = vld [vmem:[%s20] sm:$0xf]
  %v22 = vmax.f32 %v19, %v21
  %v23 = vmax.f32 %v17, %v22
  %vm24 = vcmask 68608
  %25 = vst.msk [vmem:[#allocation2] sm:$0xf] %vm24, 0.0
  %vm26 = vcmask 142408
  %27 = vst.msk [vmem:[#allocation2 + $0x4] sm:$0xf] %vm26, 0.0
  %29 = vrot.lane.b32.xlu0 %v23, 9
  %v30 = vpop.permute.xlu0 %29
  %v31 = vrot.slane %v30, 4
  %vm32 = vcmask 72704
  %v33 = vsel %vm32, %v31, %v30
  %vm35 = vcmask 1043528
  %vm36 = vcmask 72708
  %vm37 = vmor %vm36, %vm35
  %38 = vst.msk [vmem:[#allocation2] sm:$0xff] %vm37, %v33
  %v39 = vlaneseq
  %v40 = vand.u32 %v39, 127
  %v41 = vand.u32 %v40, 7
  %v42 = vshra.s32 %v40, 3
  %v43 = vand.u32 %v42, 7
  %vm44 = vcmp.gt.s32.totalorder %v43, 0
  %vm45 = vcmp.lt.s32.totalorder %v43, 7
  %vm46 = vcmp.gt.s32.totalorder %v41, 0
  %vm47 = vcmp.lt.s32.totalorder %v41, 7
  %v48 = vld [vmem:[#allocation2] sm:$0xf]
  %vm49 = vmand %vm44, %vm46
  %v50 = vsel %vm49, 1, 0
  %vm51 = vcmp.eq.s32.totalorder %v50, 1
  %v52 = vsel %vm51, %v48, 0.0
  %53 = vst [vmem:[#allocation3] sm:$0xf] %v52
  %v54 = vld [vmem:[#allocation2] sm:$0xff]
  %v55 = vsel %vm44, 1, 0
  %vm56 = vcmp.eq.s32.totalorder %v55, 1
  %v58 = vcombine.high %v54, %v54
  %59 = vrot.lane.b32.xlu0 %v54, 127
  %v60 = vpop.permute.xlu0 %59
  %61 = vrot.lane.b32.xlu0 %v58, 127
  %v62 = vpop.permute.xlu0 %61
  %vm63 = vcmask 1039360
  %v64 = vsel %vm63, %v60, %v62
  %v66 = vsel %vm56, %v64, 0.0
  %67 = vst [vmem:[#allocation3 + $0x4] sm:$0xf] %v66
  %v68 = vld [vmem:[#allocation2] sm:$0xff]
  %vm69 = vmand %vm44, %vm47
  %v70 = vsel %vm69, 1, 0
  %vm71 = vcmp.eq.s32.totalorder %v70, 1
  %v73 = vcombine.high %v68, %v68
  %74 = vrot.lane.b32.xlu0 %v68, 126
  %v75 = vpop.permute.xlu0 %74
  %76 = vrot.lane.b32.xlu0 %v73, 126
  %v77 = vpop.permute.xlu0 %76
  %vm78 = vcmask 1031168
  %v79 = vsel %vm78, %v75, %v77
  %v81 = vsel %vm71, %v79, 0.0
  %82 = vst [vmem:[#allocation3 + $0x8] sm:$0xf] %v81
  %v83 = vld [vmem:[#allocation2] sm:$0xff]
  %v84 = vsel %vm46, 1, 0
  %vm85 = vcmp.eq.s32.totalorder %v84, 1
  %v87 = vcombine.high %v83, %v83
  %88 = vrot.lane.b32.xlu0 %v83, 120
  %v89 = vpop.permute.xlu0 %88
  %90 = vrot.lane.b32.xlu0 %v87, 120
  %v91 = vpop.permute.xlu0 %90
  %vm92 = vcmask 982016
  %v93 = vsel %vm92, %v89, %v91
  %v95 = vsel %vm85, %v93, 0.0
  %96 = vst [vmem:[#allocation3 + $0xc] sm:$0xf] %v95
  %v97 = vld [vmem:[#allocation2] sm:$0xff]
  %v99 = vcombine.high %v97, %v97
  %100 = vrot.lane.b32.xlu0 %v97, 119
  %v101 = vpop.permute.xlu0 %100
  %102 = vrot.lane.b32.xlu0 %v99, 119
  %v103 = vpop.permute.xlu0 %102
  %vm104 = vcmask 973824
  %v105 = vsel %vm104, %v101, %v103
  %107 = vst [vmem:[#allocation3 + $0x10] sm:$0xf] %v105
  %v108 = vld [vmem:[#allocation2] sm:$0xff]
  %v109 = vsel %vm47, 1, 0
  %vm110 = vcmp.eq.s32.totalorder %v109, 1
  %v112 = vcombine.high %v108, %v108
  %113 = vrot.lane.b32.xlu0 %v108, 118
  %v114 = vpop.permute.xlu0 %113
  %115 = vrot.lane.b32.xlu0 %v112, 118
  %v116 = vpop.permute.xlu0 %115
  %vm117 = vcmask 965632
  %v118 = vsel %vm117, %v114, %v116
  %v120 = vsel %vm110, %v118, 0.0
  %121 = vst [vmem:[#allocation3 + $0x14] sm:$0xf] %v120
  %v122 = vld [vmem:[#allocation2] sm:$0xff]
  %vm123 = vmand %vm45, %vm46
  %v124 = vsel %vm123, 1, 0
  %vm125 = vcmp.eq.s32.totalorder %v124, 1
  %v127 = vcombine.high %v122, %v122
  %128 = vrot.lane.b32.xlu0 %v122, 112
  %v129 = vpop.permute.xlu0 %128
  %130 = vrot.lane.b32.xlu0 %v127, 112
  %v131 = vpop.permute.xlu0 %130
  %vm132 = vcmask 916480
  %v133 = vsel %vm132, %v129, %v131
  %v135 = vsel %vm125, %v133, 0.0
  %136 = vst [vmem:[#allocation3 + $0x18] sm:$0xf] %v135
  %v137 = vld [vmem:[#allocation2] sm:$0xff]
  %v138 = vsel %vm45, 1, 0
  %vm139 = vcmp.eq.s32.totalorder %v138, 1
  %v141 = vcombine.high %v137, %v137
  %142 = vrot.lane.b32.xlu0 %v137, 111
  %v143 = vpop.permute.xlu0 %142
  %144 = vrot.lane.b32.xlu0 %v141, 111
  %v145 = vpop.permute.xlu0 %144
  %vm146 = vcmask 908288
  %v147 = vsel %vm146, %v143, %v145
  %v149 = vsel %vm139, %v147, 0.0
  %150 = vst [vmem:[#allocation3 + $0x1c] sm:$0xf] %v149
  %v151 = vld [vmem:[#allocation2] sm:$0xff]
  %vm152 = vmand %vm45, %vm47
  %v153 = vsel %vm152, 1, 0
  %vm154 = vcmp.eq.s32.totalorder %v153, 1
  %v156 = vcombine.high %v151, %v151
  %157 = vrot.lane.b32.xlu0 %v151, 110
  %v158 = vpop.permute.xlu0 %157
  %159 = vrot.lane.b32.xlu0 %v156, 110
  %v160 = vpop.permute.xlu0 %159
  %vm161 = vcmask 900096
  %v162 = vsel %vm161, %v158, %v160
  %v164 = vsel %vm154, %v162, 0.0
  %165 = vst [vmem:[#allocation3 + $0x20] sm:$0xf] %v164
  %v166 = vld [vmem:[%s1] sm:$0xff]
  %v167 = vld [vmem:[#allocation3] sm:$0xff]
  %v168 = vld [vmem:[#allocation3 + $0x8] sm:$0xff]
  %v169 = vld [vmem:[#allocation3 + $0x10] sm:$0xff]
  %v170 = vld [vmem:[#allocation3 + $0x18] sm:$0xff]
  %v171 = vld [vmem:[#allocation3 + $0x20] sm:$0xf]
  %vm172 = vcmask 293888
  %v174 = vsel %vm172, %v166, 0
  %vm176 = vcmask 1043456
  %v178 = vsel %vm176, %v171, 0
  %180 = vmatprep.subr.mxu0 0.0
  %181 = vmatpush1.msra.mxu0 %v167
  %182 = vmatprep.subr.mxu0 0.0
  %183 = vmatpush1.msra.mxu0 %v168
  %184 = vmatprep.subr.mxu0 0.0
  %185 = vmatpush1.msra.mxu0 %v169
  %186 = vmatprep.subr.mxu0 0.0
  %187 = vmatpush1.msra.mxu0 %v170
  %188 = vmatprep.subr.mxu0 0.0
  %189 = vmatpush1.msra.mxu0 %v178
  %190 = vmatprep.subr.mxu0 0.0
  %191 = vmatpush1.msra.mxu0 0.0
  %192 = vmatprep.subr.mxu0 0.0
  %193 = vmatpush1.msra.mxu0 0.0
  %194 = vmatprep.subr.mxu0 0.0
  %195 = vmatpush1.msra.mxu0 0.0
  %196 = vmatprep.subr.mxu0 0.0
  %197 = vmatpush1.msra.mxu0 0.0
  %198 = vmatprep.subr.mxu0 0.0
  %199 = vmatpush1.msra.mxu0 0.0
  %200 = vmatprep.subr.mxu0 0.0
  %201 = vmatpush1.msra.mxu0 0.0
  %202 = vmatprep.subr.mxu0 0.0
  %203 = vmatpush1.msra.mxu0 0.0
  %204 = vmatprep.subr.mxu0 0.0
  %205 = vmatpush1.msra.mxu0 0.0
  %206 = vmatprep.subr.mxu0 0.0
  %207 = vmatpush1.msra.mxu0 0.0
  %208 = vmatprep.subr.mxu0 0.0
  %209 = vmatpush1.msra.mxu0 0.0
  %210 = vmatprep.subr.mxu0 0.0
  %211 = vmatpush1.msra.mxu0 0.0
  %212 = vmatprep.subr.mxu0 0.0
  %213 = vmatpush1.msra.mxu0 0.0
  %214 = vmatprep.subr.mxu0 0.0
  %215 = vmatpush1.msra.mxu0 0.0
  %216 = vmatprep.subr.mxu0 0.0
  %217 = vmatpush1.msra.mxu0 0.0
  %218 = vmatprep.subr.mxu0 0.0
  %219 = vmatpush1.msra.mxu0 0.0
  %220 = vmatprep.subr.mxu0 0.0
  %221 = vmatpush1.msra.mxu0 0.0
  %222 = vmatprep.subr.mxu0 0.0
  %223 = vmatpush1.msra.mxu0 0.0
  %224 = vmatprep.subr.mxu0 0.0
  %225 = vmatpush1.msra.mxu0 0.0
  %226 = vmatprep.subr.mxu0 0.0
  %227 = vmatpush1.msra.mxu0 0.0
  %228 = vmatprep.subr.mxu0 0.0
  %229 = vmatpush1.msra.mxu0 0.0
  %230 = vmatprep.subr.mxu0 0.0
  %231 = vmatpush1.msra.mxu0 0.0
  %232 = vmatprep.subr.mxu0 0.0
  %233 = vmatpush1.msra.mxu0 0.0
  %234 = vmatprep.subr.mxu0 0.0
  %235 = vmatpush1.msra.mxu0 0.0
  %236 = vmatprep.subr.mxu0 0.0
  %237 = vmatpush1.msra.mxu0 0.0
  %238 = vmatprep.subr.mxu0 0.0
  %239 = vmatpush1.msra.mxu0 0.0
  %240 = vmatprep.subr.mxu0 0.0
  %241 = vmatpush1.msra.mxu0 0.0
  %242 = vmatprep.subr.mxu0 0.0
  %243 = vmatpush1.msra.mxu0 0.0
  %244 = vmatprep.mubr.f32.mxu0 0.0
  %245 = vmatmul.mubr.f32.gmra.mrb[0].mxu0 %v174
  %v246 = vpop.f32.mrb[0].mxu0
  %v247 = vadd.f32 0.0, %v246
  %v248 = vpop.f32.mrb[0].mxu0
  %249 = vdwg.mxu0
  %250 = vst [vmem:[%s2] sm:$0xff] %v247
  %251 = vadd.xlane.f32.xlu0 %v247
  %v252 = vpop.xlane.xlu0 %251
  %vm253 = vcmask 7168
  %254 = vst.msk [vmem:[%s3] sm:$0xff] %vm253, %v252
  %v255 = vmul.f32 %v247, %v247
  %256 = vadd.xlane.f32.xlu0 %v255
  %v257 = vpop.xlane.xlu0 %256
  %258 = vst.msk [vmem:[%s4] sm:$0xff] %vm253, %v257
  // Predicated region
  $region10: #{downsized_convolution_block.3} parent=0 // pred_check
    _
  $region11: #{downsized_convolution_block.3} parent=0 // pred_check_branch
    %260 = sbr.rel (0) target = $region13
  $region12: #{downsized_convolution_block.3} parent=0 // pred_region
    _
  $region13: #{downsized_convolution_block.3} parent=0 // pred_fallthru
    _
  // Predicated region
  $region14: #{downsized_convolution_block.3} parent=0 // pred_check
    _
  $region15: #{downsized_convolution_block.3} parent=0 // pred_check_branch
    %262 = sbr.rel (0) target = $region17
  $region16: #{downsized_convolution_block.3} parent=0 // pred_region
    _
  $region17: #{downsized_convolution_block.3} parent=0 // pred_fallthru
    _
  // Predicated region
  $region18: #{downsized_convolution_block.3} parent=0 // pred_check
    _
  $region19: #{downsized_convolution_block.3} parent=0 // pred_check_branch
    %264 = sbr.rel (0) target = $region21
  $region20: #{downsized_convolution_block.3} parent=0 // pred_region
    _
  $region21: #{downsized_convolution_block.3} parent=0 // pred_fallthru
    _
  // Predicated region
  $region22: #{downsized_convolution_block.3} parent=0 // pred_check
    _
  $region23: #{downsized_convolution_block.3} parent=0 // pred_check_branch
    %266 = sbr.rel (0) target = $region25
  $region24: #{downsized_convolution_block.3} parent=0 // pred_region
    _
  $region25: #{downsized_convolution_block.3} parent=0 // pred_fallthru
    _
  // Predicated region
  $region26: #{downsized_convolution_block.3} parent=0 // pred_check
    _
  $region27: #{downsized_convolution_block.3} parent=0 // pred_check_branch
    %268 = sbr.rel (0) target = $region29
  $region28: #{downsized_convolution_block.3} parent=0 // pred_region
    _
  $region29: #{downsized_convolution_block.3} parent=0 // pred_fallthru
    _
  // Predicated region
  $region30: #{downsized_convolution_block.3} parent=0 // pred_check
    _
  $region31: #{downsized_convolution_block.3} parent=0 // pred_check_branch
    %270 = sbr.rel (0) target = $region33
  $region32: #{downsized_convolution_block.3} parent=0 // pred_region
    _
  $region33: #{downsized_convolution_block.3} parent=0 // pred_fallthru
    _

// kernel: downsized_convolution_block.4
$region0: #{downsized_convolution_block.4}
  #allocation0 [shape = 'u32[]', space=smem, size = 0x4, offset = 0x4, fixed_abs, tag = 'smem constant byte address 0x4 - core index']
  #allocation1 [shape = 'u32[144,128]{1,0:T(1,128)}', space=vmem, size = 0x12000, scoped, tag = 'internal scratch']
  #allocation2 [shape = 'f32[8,146]{1,0:T(8,128)}', space=vmem, size = 0x2000, scoped, tag = 'scratch operand']
  #allocation3 [shape = 'f32[72,128]{1,0:T(8,128)}', space=vmem, size = 0x9000, scoped, tag = 'scratch operand']
  %s0 = inlined_call_operand.vmem [shape: f32[8,128], index: 0, kind: input, shape index: {}]
  %s1 = inlined_call_operand.vmem [shape: f32[8,1], index: 1, kind: input, shape index: {}]
  %s2 = inlined_call_operand.vmem [shape: f32[8,1], index: 2, kind: input, shape index: {}]
  %s3 = inlined_call_operand.vmem [shape: f32[8,72], index: 3, kind: input, shape index: {}]
  %s4 = inlined_call_operand.vmem [shape: f32[8,128], index: 4, kind: output, shape index: {0}]
  %s5 = inlined_call_operand.vmem [shape: f32[1,8,1], index: 5, kind: output, shape index: {1}]
  %s6 = inlined_call_operand.vmem [shape: f32[1,8,1], index: 6, kind: output, shape index: {2}]
  %7 = xla_tuple %s4, %s5, %s6
  %s8 = sld [smem:[#allocation0]]
  $region42: #{downsized_convolution_block.4} parent=0
    _
  %s10 = ssub.s32 1, %s8
  %s11 = scalar_select 0, %s10, %s8
  // Predicated region
  $region2: #{downsized_convolution_block.4} parent=0 // pred_check
    _
  $region3: #{downsized_convolution_block.4} parent=0 // pred_check_branch
    %13 = sbr.rel (0) target = $region5
  $region4: #{downsized_convolution_block.4} parent=0 // pred_region
    _
  $region5: #{downsized_convolution_block.4} parent=0 // pred_fallthru
    _
  // Predicated region
  $region6: #{downsized_convolution_block.4} parent=0 // pred_check
    _
  $region7: #{downsized_convolution_block.4} parent=0 // pred_check_branch
    %15 = sbr.rel (0) target = $region9
  $region8: #{downsized_convolution_block.4} parent=0 // pred_region
    _
  $region9: #{downsized_convolution_block.4} parent=0 // pred_fallthru
    _
  // Predicated region
  $region10: #{downsized_convolution_block.4} parent=0 // pred_check
    _
  $region11: #{downsized_convolution_block.4} parent=0 // pred_check_branch
    %17 = sbr.rel (0) target = $region13
  $region12: #{downsized_convolution_block.4} parent=0 // pred_region
    _
  $region13: #{downsized_convolution_block.4} parent=0 // pred_fallthru
    _
  // Predicated region
  $region14: #{downsized_convolution_block.4} parent=0 // pred_check
    _
  $region15: #{downsized_convolution_block.4} parent=0 // pred_check_branch
    %19 = sbr.rel (0) target = $region17
  $region16: #{downsized_convolution_block.4} parent=0 // pred_region
    _
  $region17: #{downsized_convolution_block.4} parent=0 // pred_fallthru
    _
  %v20 = vld [vmem:[%s0] sm:$0xff]
  %v21 = vld [vmem:[%s1] sm:$0xff]
  %23 = vset.pattern.permute.xlu0 0
  %24 = vperm.xlu0 %23, %v21
  %v25 = vpop.permute.xlu0 %24
  %v27 = vmul.f32 %v20, %v25
  %v28 = vld [vmem:[%s2] sm:$0xff]
  %30 = vset.pattern.permute.xlu0 0
  %31 = vperm.xlu0 %30, %v28
  %v32 = vpop.permute.xlu0 %31
  %v34 = vadd.f32 %v27, %v32
  %v35 = vmul.f32 %v34, 0.5
  %v36 = vmul.f32 %v34, 0.70710677
  %v37 = vand.u32 2147483647, %v36
  %v38 = vmul.f32 %v37, 0.3275911
  %v39 = vadd.f32 %v38, 1.0
  %v40 = vrcp.pop %v39
  %v41 = vmul.f32 %v39, %v40
  %v42 = vsub.f32 2.0, %v41
  %v43 = vmul.f32 %v40, %v42
  %v44 = vmul.f32 %v43, 1.0614054
  %v45 = vadd.f32 %v44, -1.4531521
  %v46 = vmul.f32 %v45, %v43
  %v47 = vadd.f32 %v46, 1.4214138
  %v48 = vmul.f32 %v47, %v43
  %v49 = vadd.f32 %v48, -0.28449672
  %v50 = vmul.f32 %v49, %v43
  %v51 = vadd.f32 %v50, 0.2548296
  %v52 = vmul.f32 %v51, %v43
  %v53 = vsub.f32 0.0, %v37
  %v54 = vmul.f32 %v53, %v37
  %v55 = vmul.f32 %v54, 1.442695
  %v56 = vpow.pop %v55
  %v57 = vmul.f32 %v52, %v56
  %v58 = vsub.f32 1.0, %v57
  %vm59 = vcmp.ge.f32.partialorder %v36, 0.0
  %v60 = vsub.f32 0.0, %v58
  %v61 = vsel %vm59, %v58, %v60
  %v62 = vadd.f32 %v61, 1.0
  %v63 = vmul.f32 %v35, %v62
  %vm64 = vcmask 72704
  %65 = vst.msk [vmem:[#allocation2] sm:$0xff] %vm64, 0.0
  %vm66 = vcmask 146504
  %67 = vst.msk [vmem:[#allocation2 + $0x8] sm:$0xff] %vm66, 0.0
  %69 = vrot.lane.b32.xlu0 %v63, 9
  %v70 = vpop.permute.xlu0 %69
  %vm72 = vcmask 1047624
  %73 = vst.msk [vmem:[#allocation2] sm:$0xff] %vm72, %v70
  %74 = vst.msk [vmem:[#allocation2 + $0x8] sm:$0xff] %vm64, %v70
  %v75 = vlaneseq
  %v76 = vand.u32 %v75, 127
  %v77 = vand.u32 %v76, 7
  %v78 = vshra.s32 %v76, 3
  %v79 = vand.u32 %v78, 7
  %vm80 = vcmp.gt.s32.totalorder %v79, 0
  %vm81 = vcmp.lt.s32.totalorder %v79, 7
  %vm82 = vcmp.gt.s32.totalorder %v77, 0
  %vm83 = vcmp.lt.s32.totalorder %v77, 7
  %v84 = vld [vmem:[#allocation2] sm:$0xff]
  %vm85 = vmand %vm80, %vm82
  %v86 = vsel %vm85, 1, 0
  %vm87 = vcmp.eq.s32.totalorder %v86, 1
  %v88 = vsel %vm87, %v84, 0.0
  %89 = vst [vmem:[#allocation3] sm:$0xff] %v88
  %v90 = vld [vmem:[#allocation2] sm:$0xff]
  %v91 = vld [vmem:[#allocation2 + $0x8] sm:$0xff]
  %v92 = vsel %vm80, 1, 0
  %vm93 = vcmp.eq.s32.totalorder %v92, 1
  %96 = vrot.lane.b32.xlu0 %v90, 127
  %v97 = vpop.permute.xlu0 %96
  %98 = vrot.lane.b32.xlu0 %v91, 127
  %v99 = vpop.permute.xlu0 %98
  %vm100 = vcmask 1039360
  %v101 = vsel %vm100, %v97, %v99
  %v103 = vsel %vm93, %v101, 0.0
  %104 = vst [vmem:[#allocation3 + $0x8] sm:$0xff] %v103
  %v105 = vld [vmem:[#allocation2] sm:$0xff]
  %v106 = vld [vmem:[#allocation2 + $0x8] sm:$0xff]
  %vm107 = vmand %vm80, %vm83
  %v108 = vsel %vm107, 1, 0
  %vm109 = vcmp.eq.s32.totalorder %v108, 1
  %112 = vrot.lane.b32.xlu0 %v105, 126
  %v113 = vpop.permute.xlu0 %112
  %114 = vrot.lane.b32.xlu0 %v106, 126
  %v115 = vpop.permute.xlu0 %114
  %vm116 = vcmask 1031168
  %v117 = vsel %vm116, %v113, %v115
  %v119 = vsel %vm109, %v117, 0.0
  %120 = vst [vmem:[#allocation3 + $0x10] sm:$0xff] %v119
  %v121 = vld [vmem:[#allocation2] sm:$0xff]
  %v122 = vld [vmem:[#allocation2 + $0x8] sm:$0xff]
  %v123 = vsel %vm82, 1, 0
  %vm124 = vcmp.eq.s32.totalorder %v123, 1
  %127 = vrot.lane.b32.xlu0 %v121, 120
  %v128 = vpop.permute.xlu0 %127
  %129 = vrot.lane.b32.xlu0 %v122, 120
  %v130 = vpop.permute.xlu0 %129
  %vm131 = vcmask 982016
  %v132 = vsel %vm131, %v128, %v130
  %v134 = vsel %vm124, %v132, 0.0
  %135 = vst [vmem:[#allocation3 + $0x18] sm:$0xff] %v134
  %v136 = vld [vmem:[#allocation2] sm:$0xff]
  %v137 = vld [vmem:[#allocation2 + $0x8] sm:$0xff]
  %140 = vrot.lane.b32.xlu0 %v136, 119
  %v141 = vpop.permute.xlu0 %140
  %142 = vrot.lane.b32.xlu0 %v137, 119
  %v143 = vpop.permute.xlu0 %142
  %vm144 = vcmask 973824
  %v145 = vsel %vm144, %v141, %v143
  %147 = vst [vmem:[#allocation3 + $0x20] sm:$0xff] %v145
  %v148 = vld [vmem:[#allocation2] sm:$0xff]
  %v149 = vld [vmem:[#allocation2 + $0x8] sm:$0xff]
  %v150 = vsel %vm83, 1, 0
  %vm151 = vcmp.eq.s32.totalorder %v150, 1
  %154 = vrot.lane.b32.xlu0 %v148, 118
  %v155 = vpop.permute.xlu0 %154
  %156 = vrot.lane.b32.xlu0 %v149, 118
  %v157 = vpop.permute.xlu0 %156
  %vm158 = vcmask 965632
  %v159 = vsel %vm158, %v155, %v157
  %v161 = vsel %vm151, %v159, 0.0
  %162 = vst [vmem:[#allocation3 + $0x28] sm:$0xff] %v161
  %v163 = vld [vmem:[#allocation2] sm:$0xff]
  %v164 = vld [vmem:[#allocation2 + $0x8] sm:$0xff]
  %vm165 = vmand %vm81, %vm82
  %v166 = vsel %vm165, 1, 0
  %vm167 = vcmp.eq.s32.totalorder %v166, 1
  %170 = vrot.lane.b32.xlu0 %v163, 112
  %v171 = vpop.permute.xlu0 %170
  %172 = vrot.lane.b32.xlu0 %v164, 112
  %v173 = vpop.permute.xlu0 %172
  %vm174 = vcmask 916480
  %v175 = vsel %vm174, %v171, %v173
  %v177 = vsel %vm167, %v175, 0.0
  %178 = vst [vmem:[#allocation3 + $0x30] sm:$0xff] %v177
  %v179 = vld [vmem:[#allocation2] sm:$0xff]
  %v180 = vld [vmem:[#allocation2 + $0x8] sm:$0xff]
  %v181 = vsel %vm81, 1, 0
  %vm182 = vcmp.eq.s32.totalorder %v181, 1
  %185 = vrot.lane.b32.xlu0 %v179, 111
  %v186 = vpop.permute.xlu0 %185
  %187 = vrot.lane.b32.xlu0 %v180, 111
  %v188 = vpop.permute.xlu0 %187
  %vm189 = vcmask 908288
  %v190 = vsel %vm189, %v186, %v188
  %v192 = vsel %vm182, %v190, 0.0
  %193 = vst [vmem:[#allocation3 + $0x38] sm:$0xff] %v192
  %v194 = vld [vmem:[#allocation2] sm:$0xff]
  %v195 = vld [vmem:[#allocation2 + $0x8] sm:$0xff]
  %vm196 = vmand %vm81, %vm83
  %v197 = vsel %vm196, 1, 0
  %vm198 = vcmp.eq.s32.totalorder %v197, 1
  %201 = vrot.lane.b32.xlu0 %v194, 110
  %v202 = vpop.permute.xlu0 %201
  %203 = vrot.lane.b32.xlu0 %v195, 110
  %v204 = vpop.permute.xlu0 %203
  %vm205 = vcmask 900096
  %v206 = vsel %vm205, %v202, %v204
  %v208 = vsel %vm198, %v206, 0.0
  %209 = vst [vmem:[#allocation3 + $0x40] sm:$0xff] %v208
  %v210 = vld [vmem:[%s3] sm:$0xff]
  %v211 = vld [vmem:[#allocation3] sm:$0xff]
  %v212 = vld [vmem:[#allocation3 + $0x8] sm:$0xff]
  %v213 = vld [vmem:[#allocation3 + $0x10] sm:$0xff]
  %v214 = vld [vmem:[#allocation3 + $0x18] sm:$0xff]
  %v215 = vld [vmem:[#allocation3 + $0x20] sm:$0xff]
  %v216 = vld [vmem:[#allocation3 + $0x28] sm:$0xff]
  %v217 = vld [vmem:[#allocation3 + $0x30] sm:$0xff]
  %v218 = vld [vmem:[#allocation3 + $0x38] sm:$0xff]
  %v219 = vld [vmem:[#allocation3 + $0x40] sm:$0xff]
  %vm220 = vcmask 588800
  %v222 = vsel %vm220, %v210, 0
  %224 = vmatprep.subr.mxu0 0.0
  %225 = vmatpush1.msra.mxu0 %v211
  %226 = vmatprep.subr.mxu0 0.0
  %227 = vmatpush1.msra.mxu0 %v212
  %228 = vmatprep.subr.mxu0 0.0
  %229 = vmatpush1.msra.mxu0 %v213
  %230 = vmatprep.subr.mxu0 0.0
  %231 = vmatpush1.msra.mxu0 %v214
  %232 = vmatprep.subr.mxu0 0.0
  %233 = vmatpush1.msra.mxu0 %v215
  %234 = vmatprep.subr.mxu0 0.0
  %235 = vmatpush1.msra.mxu0 %v216
  %236 = vmatprep.subr.mxu0 0.0
  %237 = vmatpush1.msra.mxu0 %v217
  %238 = vmatprep.subr.mxu0 0.0
  %239 = vmatpush1.msra.mxu0 %v218
  %240 = vmatprep.subr.mxu0 0.0
  %241 = vmatpush1.msra.mxu0 %v219
  %242 = vmatprep.subr.mxu0 0.0
  %243 = vmatpush1.msra.mxu0 0.0
  %244 = vmatprep.subr.mxu0 0.0
  %245 = vmatpush1.msra.mxu0 0.0
  %246 = vmatprep.subr.mxu0 0.0
  %247 = vmatpush1.msra.mxu0 0.0
  %248 = vmatprep.subr.mxu0 0.0
  %249 = vmatpush1.msra.mxu0 0.0
  %250 = vmatprep.subr.mxu0 0.0
  %251 = vmatpush1.msra.mxu0 0.0
  %252 = vmatprep.subr.mxu0 0.0
  %253 = vmatpush1.msra.mxu0 0.0
  %254 = vmatprep.subr.mxu0 0.0
  %255 = vmatpush1.msra.mxu0 0.0
  %256 = vmatprep.subr.mxu0 0.0
  %257 = vmatpush1.msra.mxu0 0.0
  %258 = vmatprep.subr.mxu0 0.0
  %259 = vmatpush1.msra.mxu0 0.0
  %260 = vmatprep.subr.mxu0 0.0
  %261 = vmatpush1.msra.mxu0 0.0
  %262 = vmatprep.subr.mxu0 0.0
  %263 = vmatpush1.msra.mxu0 0.0
  %264 = vmatprep.subr.mxu0 0.0
  %265 = vmatpush1.msra.mxu0 0.0
  %266 = vmatprep.subr.mxu0 0.0
  %267 = vmatpush1.msra.mxu0 0.0
  %268 = vmatprep.subr.mxu0 0.0
  %269 = vmatpush1.msra.mxu0 0.0
  %270 = vmatprep.subr.mxu0 0.0
  %271 = vmatpush1.msra.mxu0 0.0
  %272 = vmatprep.subr.mxu0 0.0
  %273 = vmatpush1.msra.mxu0 0.0
  %274 = vmatprep.subr.mxu0 0.0
  %275 = vmatpush1.msra.mxu0 0.0
  %276 = vmatprep.subr.mxu0 0.0
  %277 = vmatpush1.msra.mxu0 0.0
  %278 = vmatprep.subr.mxu0 0.0
  %279 = vmatpush1.msra.mxu0 0.0
  %280 = vmatprep.subr.mxu0 0.0
  %281 = vmatpush1.msra.mxu0 0.0
  %282 = vmatprep.subr.mxu0 0.0
  %283 = vmatpush1.msra.mxu0 0.0
  %284 = vmatprep.subr.mxu0 0.0
  %285 = vmatpush1.msra.mxu0 0.0
  %286 = vmatprep.subr.mxu0 0.0
  %287 = vmatpush1.msra.mxu0 0.0
  %288 = vmatprep.mubr.f32.mxu0 0.0
  %289 = vmatmul.mubr.f32.gmra.mrb[0].mxu0 %v222
  %v290 = vpop.f32.mrb[0].mxu0
  %v291 = vadd.f32 0.0, %v290
  %v292 = vpop.f32.mrb[0].mxu0
  %293 = vdwg.mxu0
  %294 = vst [vmem:[%s4] sm:$0xff] %v291
  %295 = vadd.xlane.f32.xlu0 %v291
  %v296 = vpop.xlane.xlu0 %295
  %vm297 = vcmask 7168
  %298 = vst.msk [vmem:[%s5] sm:$0xff] %vm297, %v296
  %v299 = vmul.f32 %v291, %v291
  %300 = vadd.xlane.f32.xlu0 %v299
  %v301 = vpop.xlane.xlu0 %300
  %302 = vst.msk [vmem:[%s6] sm:$0xff] %vm297, %v301
  // Predicated region
  $region18: #{downsized_convolution_block.4} parent=0 // pred_check
    _
  $region19: #{downsized_convolution_block.4} parent=0 // pred_check_branch
    %304 = sbr.rel (0) target = $region21
  $region20: #{downsized_convolution_block.4} parent=0 // pred_region
    _
  $region21: #{downsized_convolution_block.4} parent=0 // pred_fallthru
    _
  // Predicated region
  $region22: #{downsized_convolution_block.4} parent=0 // pred_check
    _
  $region23: #{downsized_convolution_block.4} parent=0 // pred_check_branch
    %306 = sbr.rel (0) target = $region25
  $region24: #{downsized_convolution_block.4} parent=0 // pred_region
    _
  $region25: #{downsized_convolution_block.4} parent=0 // pred_fallthru
    _
  // Predicated region
  $region26: #{downsized_convolution_block.4} parent=0 // pred_check
    _
  $region27: #{downsized_convolution_block.4} parent=0 // pred_check_branch
    %308 = sbr.rel (0) target = $region29
  $region28: #{downsized_convolution_block.4} parent=0 // pred_region
    _
  $region29: #{downsized_convolution_block.4} parent=0 // pred_fallthru
    _
  // Predicated region
  $region30: #{downsized_convolution_block.4} parent=0 // pred_check
    _
  $region31: #{downsized_convolution_block.4} parent=0 // pred_check_branch
    %310 = sbr.rel (0) target = $region33
  $region32: #{downsized_convolution_block.4} parent=0 // pred_region
    _
  $region33: #{downsized_convolution_block.4} parent=0 // pred_fallthru
    _
  // Predicated region
  $region34: #{downsized_convolution_block.4} parent=0 // pred_check
    _
  $region35: #{downsized_convolution_block.4} parent=0 // pred_check_branch
    %312 = sbr.rel (0) target = $region37
  $region36: #{downsized_convolution_block.4} parent=0 // pred_region
    _
  $region37: #{downsized_convolution_block.4} parent=0 // pred_fallthru
    _
  // Predicated region
  $region38: #{downsized_convolution_block.4} parent=0 // pred_check
    _
  $region39: #{downsized_convolution_block.4} parent=0 // pred_check_branch
    %314 = sbr.rel (0) target = $region41
  $region40: #{downsized_convolution_block.4} parent=0 // pred_region
    _
  $region41: #{downsized_convolution_block.4} parent=0 // pred_fallthru
    _

</llo_original>
